<compile_context>
chip_gen: v7x
topology: tpu7x:2x2x1
jax: 0.10.0
libtpu: 0.0.40
codegen_flags: <defaults>
</compile_context>

<pallas_src>
import math
import functools

import jax
import jax.numpy as jnp
from jax import lax
from jax.experimental import pallas as pl
from jax.experimental.pallas import tpu as pltpu


# ----------------------------------------------------------------------------
# Tile-size helpers
# ----------------------------------------------------------------------------
def _pick_tile(n, cap, align=8):
    """Largest `align`-aligned tile <= cap dividing n (n itself if n <= cap)."""
    if n <= cap:
        return n
    t = cap - cap % align
    while t >= align:
        if n % t == 0:
            return t
        t -= align
    return n


def _row_tile(n, cap=512):
    """Row tile for the projection GEMM; prefer >=2 programs (v7x megacore)."""
    if n >= 16 and n % 16 == 0:
        return _pick_tile(n, min(cap, n // 2))
    return _pick_tile(n, cap)


# ----------------------------------------------------------------------------
# Kernel A: fused projection GEMM
#   y = x99 @ W_all + b_all,  W_all columns = [Wq/sqrt(in) | Wffn | Wk | Wv]
#   outputs: q_scaled (bf16), ffn (f32), [k|v] (bf16)
# ----------------------------------------------------------------------------
def _proj_kernel(x_ref, w_ref, b_ref, q_ref, ffn_ref, kv_ref, *, hf):
    y = jnp.dot(x_ref[...], w_ref[...],
                preferred_element_type=jnp.float32) + b_ref[...]
    q_ref[...] = y[:, :hf].astype(q_ref.dtype)          # scaled q  (bf16)
    ffn_ref[...] = y[:, hf:2 * hf]                      # FFN(x99)  (f32)
    kv_ref[...] = y[:, 2 * hf:].astype(kv_ref.dtype)    # [k | v]   (bf16)


def fused_projection(x, w_all, b_all, *, tm=None):
    n, din = x.shape
    dout = w_all.shape[1]          # 4 * H * F
    hf = dout // 4                 # H * F
    if tm is None:
        tm = _row_tile(n)
    assert n % tm == 0
    kern = functools.partial(_proj_kernel, hf=hf)
    return pl.pallas_call(
        kern,
        out_shape=(jax.ShapeDtypeStruct((n, hf), jnp.bfloat16),       # q
                   jax.ShapeDtypeStruct((n, hf), jnp.float32),        # ffn
                   jax.ShapeDtypeStruct((n, 2 * hf), jnp.bfloat16)),  # [k|v]
        grid=(n // tm,),
        in_specs=[pl.BlockSpec((tm, din), lambda i: (i, 0)),
                  pl.BlockSpec((din, dout), lambda i: (0, 0)),   # resident
                  pl.BlockSpec((1, dout), lambda i: (0, 0))],    # resident
        out_specs=(pl.BlockSpec((tm, hf), lambda i: (i, 0)),
                   pl.BlockSpec((tm, hf), lambda i: (i, 0)),
                   pl.BlockSpec((tm, 2 * hf), lambda i: (i, 0))),
        compiler_params=pltpu.CompilerParams(
            dimension_semantics=("parallel",)),
    )(x, w_all, b_all)


# ----------------------------------------------------------------------------
# Kernel B: fused masked multi-head attention (all views) + Wo + FFN residual
#           + LayerNorm residual.
#   grid = (dst_tile, src_tile)  — src last, "arbitrary"
#   per head h (static loop):
#       sc = exp(clip(q_h @ k_h^T, -5, 5))              once per (d, s) tile
#       per view v:  masked = sc * adj_v
#           wv_acc[v,h] += masked @ v_h          (MXU)
#           z_acc [v,h] += masked @ ones(F)      (MXU, broadcast along F)
#   finalize (src == last), per view:
#       wv  = wv / (z + 1)
#       o   = wv @ Wo^T + bo
#       hh  = ffn + o
#       out = hh + LayerNorm(hh)      -> written as one lane-dense (tq, V*HF)
# ----------------------------------------------------------------------------
def _attn_kernel(q_ref, ffn_ref, src_ref, adj_ref, wo_ref, bo_ref, g_ref,
                 bt_ref, out_ref, wv_acc, z_acc, *,
                 num_head, o_feats, n_views, eps):
    hf = num_head * o_feats
    s_idx = pl.program_id(1)
    n_src = pl.num_programs(1)

    @pl.when(s_idx == 0)
    def _init():
        wv_acc[...] = jnp.zeros_like(wv_acc)
        z_acc[...] = jnp.zeros_like(z_acc)

    q = q_ref[...]                                 # (tq, HF)   bf16, pre-scaled
    src = src_ref[...]                             # (tk, 2HF)  bf16: [k | v]
    adj_b = [adj_ref[v].astype(jnp.bfloat16)       # per-view (tq, tk) masks
             for v in range(n_views)]
    tk = src.shape[0]
    # z on the MXU: all-ones rhs makes the row-sum land broadcast along F.
    ones_rhs = jnp.ones((tk, o_feats), jnp.bfloat16)

    for h in range(num_head):                      # static head loop
        qh = q[:, h * o_feats:(h + 1) * o_feats]                       # (tq, F)
        kh = src[:, h * o_feats:(h + 1) * o_feats]                     # (tk, F)
        vh = src[:, hf + h * o_feats: hf + (h + 1) * o_feats]          # (tk, F)
        sc = lax.dot_general(qh, kh,
                             dimension_numbers=(((1,), (1,)), ((), ())),
                             preferred_element_type=jnp.float32)       # (tq, tk)
        # 1/sqrt(in_feats) already folded into q; clip-before-exp as in the ref.
        sc = jnp.exp(jnp.clip(sc, -5.0, 5.0)).astype(jnp.bfloat16)
        for v in range(n_views):                   # all views share sc
            masked = sc * adj_b[v]                 # (tq, tk) bf16
            lo = v * hf + h * o_feats
            wv_acc[:, lo:lo + o_feats] += jnp.dot(
                masked, vh, preferred_element_type=jnp.float32)
            z_acc[:, lo:lo + o_feats] += jnp.dot(
                masked, ones_rhs, preferred_element_type=jnp.float32)

    @pl.when(s_idx == n_src - 1)
    def _finalize():
        ffn = ffn_ref[...]                         # f32, only loaded here
        wo = wo_ref[...]
        bo = bo_ref[...]
        gam = g_ref[...]
        bet = bt_ref[...]
        outs = []
        for v in range(n_views):
            wv = wv_acc[:, v * hf:(v + 1) * hf]
            z = z_acc[:, v * hf:(v + 1) * hf]
            wv = wv / (z + 1.0)                    # exact divide, once per tile
            o = jnp.dot(wv, wo, preferred_element_type=jnp.float32) + bo
            hh = ffn + o
            mu = jnp.mean(hh, axis=-1, keepdims=True)
            var = jnp.mean(jnp.square(hh - mu), axis=-1, keepdims=True)
            ln = (hh - mu) * lax.rsqrt(var + eps) * gam + bet
            outs.append(hh + ln)
        out_ref[...] = jnp.concatenate(outs, axis=-1)   # lane-dense store


def fused_attention(q, ffn, src, adj, wo_t, bo, gamma, beta, *,
                    num_head, o_feats, tq=None, tk=None):
    n, hf = q.shape
    assert hf == num_head * o_feats
    nv = adj.shape[0]
    if tq is None:
        # Big dst tile: src/[k|v]/adj are re-streamed n/tq times from HBM.
        tq = _pick_tile(n, 512, align=8)
    if tk is None:
        # tk is the lane dim of the adj block -> 128-aligned (or full N).
        tk = _pick_tile(n, 512, align=128)
    assert n % tq == 0 and n % tk == 0

    kern = functools.partial(_attn_kernel, num_head=num_head,
                             o_feats=o_feats, n_views=nv, eps=1e-5)
    const2 = lambda d, s: (0, 0)
    # NOTE: on v5e, if DMA on the adj/src streams is exposed after the bf16
    # cast, bump pipeline_mode=pl.Buffered(3) on those two BlockSpecs.
    return pl.pallas_call(
        kern,
        out_shape=jax.ShapeDtypeStruct((n, nv * hf), jnp.float32),
        grid=(n // tq, n // tk),
        in_specs=[
            pl.BlockSpec((tq, hf), lambda d, s: (d, 0)),          # q  (bf16)
            pl.BlockSpec((tq, hf), lambda d, s: (d, 0)),          # ffn (f32)
            pl.BlockSpec((tk, 2 * hf), lambda d, s: (s, 0)),      # [k|v] bf16
            pl.BlockSpec((nv, tq, tk), lambda d, s: (0, d, s)),   # adj (int8)
            pl.BlockSpec((hf, hf), const2),                       # Wo^T resident
            pl.BlockSpec((1, hf), const2),                        # bo
            pl.BlockSpec((1, hf), const2),                        # gamma
            pl.BlockSpec((1, hf), const2),                        # beta
        ],
        out_specs=pl.BlockSpec((tq, nv * hf), lambda d, s: (d, 0)),
        scratch_shapes=[pltpu.VMEM((tq, nv * hf), jnp.float32),   # wv acc
                        pltpu.VMEM((tq, nv * hf), jnp.float32)],  # z  acc
        compiler_params=pltpu.CompilerParams(
            dimension_semantics=("parallel", "arbitrary"),
            vmem_limit_bytes=32 * 1024 * 1024),   # explicit budget (v7x-safe)
    )(q, ffn, src, adj, wo_t, bo, gamma, beta)


# ----------------------------------------------------------------------------
# Wrapper
# ----------------------------------------------------------------------------
@functools.partial(jax.jit, static_argnames=("num_head", "o_feats"))
def _forward(x99, adj, w_all, b_all, wo_t, bo, gamma, beta, *,
             num_head, o_feats):
    q, ffn, src = fused_projection(x99, w_all, b_all)
    return fused_attention(q, ffn, src, adj, wo_t, bo, gamma, beta,
                           num_head=num_head, o_feats=o_feats)


def transformer_layer_od(x_dict, adj_dict, prep, v_id_list):
    x99 = jnp.concatenate([x_dict[v] for v in v_id_list], axis=1)
    # TODO(synk): int8 adjacency is exact only for binary 0/1 edge masks (the
    # graph case); weighted adjacencies would need a float dtype here.
    adj = jnp.stack([adj_dict[v] for v in v_id_list], 0).astype(jnp.int8)
    out_all = _forward(x99, adj, prep["w_all"], prep["b_all"], prep["wo_t"],
                       prep["bo"], prep["gamma"], prep["beta"],
                       num_head=prep["num_head"], o_feats=prep["o_feats"])
    hf = prep["num_head"] * prep["o_feats"]
    return {v_id: out_all[:, i * hf:(i + 1) * hf]
            for i, v_id in enumerate(v_id_list)}


# ----------------------------------------------------------------------------
# Parameters: PyTorch-layout init + one-time kernel-friendly packing
# ----------------------------------------------------------------------------
def init_params(key, in_feats, o_feats, num_head, n_views):
    o_head = o_feats * num_head
    din = in_feats * n_views
    keys = jax.random.split(key, 5)

    def lin(k, dout, dinp):
        kw, kb = jax.random.split(k)
        bound = 1.0 / math.sqrt(dinp)
        w = jax.random.uniform(kw, (dout, dinp), jnp.float32, -bound, bound)
        b = jax.random.uniform(kb, (dout,), jnp.float32, -bound, bound)
        return w, b

    p = {}
    p["aggr_wq"], p["aggr_bq"] = lin(keys[0], o_head, din)
    p["aggr_wk"], p["aggr_bk"] = lin(keys[1], o_head, din)
    p["aggr_wv"], p["aggr_bv"] = lin(keys[2], o_head, din)
    p["aggr_wo"], p["aggr_bo"] = lin(keys[3], o_head, o_head)
    p["aggr_ffn_w"], p["aggr_ffn_b"] = lin(keys[4], o_head, din)
    p["ln_gamma"] = jnp.ones((o_head,), jnp.float32)
    p["ln_beta"] = jnp.zeros((o_head,), jnp.float32)
    return p


def prepare_params(params, in_feats, o_feats, num_head):
    """One-time packing: fuse + pre-transpose weights, fold 1/sqrt(in) into Wq."""
    inv = 1.0 / math.sqrt(float(in_feats))
    hf = o_feats * num_head
    w_all = jnp.concatenate([
        (params["aggr_wq"] * inv).T,   # q  (pre-scaled)
        params["aggr_ffn_w"].T,        # ffn
        params["aggr_wk"].T,           # k
        params["aggr_wv"].T,           # v
    ], axis=1)                          # (Din, 4*H*F)
    b_all = jnp.concatenate([
        params["aggr_bq"] * inv, params["aggr_ffn_b"],
        params["aggr_bk"], params["aggr_bv"]]).reshape(1, -1)
    return {
        "w_all": w_all,
        "b_all": b_all,
        "wo_t": params["aggr_wo"].T,                 # (H*F, H*F)
        "bo": params["aggr_bo"].reshape(1, hf),
        "gamma": params["ln_gamma"].reshape(1, hf),
        "beta": params["ln_beta"].reshape(1, hf),
        "num_head": num_head,
        "o_feats": o_feats,
    }


if __name__ == "__main__":
    in_feats, o_feats, num_head = 32, 16, 4
    v_id_list = [0, 1]
    N = 16

    key = jax.random.PRNGKey(0)
    k1, k2, k3, k4, kp = jax.random.split(key, 5)

    x_dict = {
        0: jax.random.normal(k1, (N, in_feats), jnp.float32),
        1: jax.random.normal(k2, (N, in_feats), jnp.float32),
    }
    adj_dict = {
        0: (jax.random.uniform(k3, (N, N)) < 0.5).astype(jnp.float32),
        1: (jax.random.uniform(k4, (N, N)) < 0.5).astype(jnp.float32),
    }

    params = init_params(kp, in_feats, o_feats, num_head, len(v_id_list))
    prep = prepare_params(params, in_feats, o_feats, num_head)

    out = transformer_layer_od(x_dict, adj_dict, prep, v_id_list)
    for v_id in v_id_list:
        jax.block_until_ready(out[v_id])
        assert out[v_id].shape == (N, o_feats * num_head)
        assert bool(jnp.all(jnp.isfinite(out[v_id])))
    print("KERNEL_OK")
</pallas_src>

<mosaic_0001>
module attributes {stable_mosaic.version = 11 : i64} {
  func.func @_proj_kernel(%arg0: i32, %arg1: memref<8x64xf32, #tpu.memory_space<vmem>>, %arg2: memref<64x256xf32, #tpu.memory_space<vmem>>, %arg3: memref<1x256xf32, #tpu.memory_space<vmem>>, %arg4: memref<8x64xbf16, #tpu.memory_space<vmem>>, %arg5: memref<8x64xf32, #tpu.memory_space<vmem>>, %arg6: memref<8x128xbf16, #tpu.memory_space<vmem>>) attributes {dimension_semantics = [#tpu.dimension_semantics<parallel>], iteration_bounds = array<i64: 2>, scalar_prefetch = 0 : i64, scratch_operands = 0 : i64, tpu.core_type = #tpu.core_type<tc>, window_params = [{transform_indices = @transform_0, window_bounds = array<i64: 8, 64>}, {pipeline_mode = #tpu.pipeline_mode<synchronous>, transform_indices = @transform_1, window_bounds = array<i64: 64, 256>}, {pipeline_mode = #tpu.pipeline_mode<synchronous>, transform_indices = @transform_2, window_bounds = array<i64: 1, 256>}, {transform_indices = @transform_3, window_bounds = array<i64: 8, 64>}, {transform_indices = @transform_4, window_bounds = array<i64: 8, 64>}, {transform_indices = @transform_5, window_bounds = array<i64: 8, 128>}]} {
    %c0 = arith.constant 0 : index
    %c0_0 = arith.constant 0 : index
    %0 = vector.load %arg1[%c0, %c0_0] : memref<8x64xf32, #tpu.memory_space<vmem>>, vector<8x64xf32>
    %c0_1 = arith.constant 0 : index
    %c0_2 = arith.constant 0 : index
    %1 = vector.load %arg2[%c0_1, %c0_2] : memref<64x256xf32, #tpu.memory_space<vmem>>, vector<64x256xf32>
    %cst = arith.constant dense<0.000000e+00> : vector<8x256xf32>
    %2 = tpu.matmul %0, %1, %cst {dimension_numbers = #tpu.dot_dimension_numbers<[1], [0], [0], [1], [0, 0, 1, 1], [], []>} : vector<8x64xf32>, vector<64x256xf32>, vector<8x256xf32> -> vector<8x256xf32>
    %c0_3 = arith.constant 0 : index
    %c0_4 = arith.constant 0 : index
    %3 = vector.load %arg3[%c0_3, %c0_4] : memref<1x256xf32, #tpu.memory_space<vmem>>, vector<1x256xf32>
    %4 = vector.broadcast %3 : vector<1x256xf32> to vector<8x256xf32>
    %5 = arith.addf %2, %4 : vector<8x256xf32>
    %6 = vector.extract_strided_slice %5 {offsets = [0, 0], sizes = [8, 64], strides = [1, 1]} : vector<8x256xf32> to vector<8x64xf32>
    %7 = arith.truncf %6 : vector<8x64xf32> to vector<8x64xbf16>
    %c0_5 = arith.constant 0 : index
    %c0_6 = arith.constant 0 : index
    %8 = vector.load %arg4[%c0_5, %c0_6] : memref<8x64xbf16, #tpu.memory_space<vmem>>, vector<8x64xbf16>
    tpu.vector_store %arg4[%c0_5, %c0_6], %7 {strides = array<i32>} : memref<8x64xbf16, #tpu.memory_space<vmem>>, vector<8x64xbf16>,
    %9 = vector.extract_strided_slice %5 {offsets = [0, 64], sizes = [8, 64], strides = [1, 1]} : vector<8x256xf32> to vector<8x64xf32>
    %c0_7 = arith.constant 0 : index
    %c0_8 = arith.constant 0 : index
    %10 = vector.load %arg5[%c0_7, %c0_8] : memref<8x64xf32, #tpu.memory_space<vmem>>, vector<8x64xf32>
    tpu.vector_store %arg5[%c0_7, %c0_8], %9 {strides = array<i32>} : memref<8x64xf32, #tpu.memory_space<vmem>>, vector<8x64xf32>,
    %11 = vector.extract_strided_slice %5 {offsets = [0, 128], sizes = [8, 128], strides = [1, 1]} : vector<8x256xf32> to vector<8x128xf32>
    %12 = arith.truncf %11 : vector<8x128xf32> to vector<8x128xbf16>
    %c0_9 = arith.constant 0 : index
    %c0_10 = arith.constant 0 : index
    %13 = vector.load %arg6[%c0_9, %c0_10] : memref<8x128xbf16, #tpu.memory_space<vmem>>, vector<8x128xbf16>
    tpu.vector_store %arg6[%c0_9, %c0_10], %12 {strides = array<i32>} : memref<8x128xbf16, #tpu.memory_space<vmem>>, vector<8x128xbf16>,
    return
  }
  func.func @transform_0(%arg0: i32) -> (i32, i32) {
    %c0_i32 = arith.constant 0 : i32
    %c0_i32_0 = arith.constant 0 : i32
    return %arg0, %c0_i32 : i32, i32
  }
  func.func @transform_1(%arg0: i32) -> (i32, i32) {
    %c0_i32 = arith.constant 0 : i32
    %c0_i32_0 = arith.constant 0 : i32
    %c0_i32_1 = arith.constant 0 : i32
    return %c0_i32, %c0_i32_0 : i32, i32
  }
  func.func @transform_2(%arg0: i32) -> (i32, i32) {
    %c0_i32 = arith.constant 0 : i32
    %c0_i32_0 = arith.constant 0 : i32
    %c0_i32_1 = arith.constant 0 : i32
    return %c0_i32, %c0_i32_0 : i32, i32
  }
  func.func @transform_3(%arg0: i32) -> (i32, i32) {
    %c0_i32 = arith.constant 0 : i32
    %c0_i32_0 = arith.constant 0 : i32
    return %arg0, %c0_i32 : i32, i32
  }
  func.func @transform_4(%arg0: i32) -> (i32, i32) {
    %c0_i32 = arith.constant 0 : i32
    %c0_i32_0 = arith.constant 0 : i32
    return %arg0, %c0_i32 : i32, i32
  }
  func.func @transform_5(%arg0: i32) -> (i32, i32) {
    %c0_i32 = arith.constant 0 : i32
    %c0_i32_0 = arith.constant 0 : i32
    return %arg0, %c0_i32 : i32, i32
  }
}

module attributes {stable_mosaic.version = 11 : i64} {
  func.func @_attn_kernel(%arg0: i32, %arg1: i32, %arg2: memref<16x64xbf16, #tpu.memory_space<vmem>>, %arg3: memref<16x64xf32, #tpu.memory_space<vmem>>, %arg4: memref<16x128xbf16, #tpu.memory_space<vmem>>, %arg5: memref<2x16x16xi8, #tpu.memory_space<vmem>>, %arg6: memref<64x64xf32, #tpu.memory_space<vmem>>, %arg7: memref<1x64xf32, #tpu.memory_space<vmem>>, %arg8: memref<1x64xf32, #tpu.memory_space<vmem>>, %arg9: memref<1x64xf32, #tpu.memory_space<vmem>>, %arg10: memref<16x128xf32, #tpu.memory_space<vmem>>, %arg11: memref<16x128xf32, #tpu.memory_space<vmem>>, %arg12: memref<16x128xf32, #tpu.memory_space<vmem>>) attributes {dimension_semantics = [#tpu.dimension_semantics<parallel>, #tpu.dimension_semantics<arbitrary>], iteration_bounds = array<i64: 1, 1>, scalar_prefetch = 0 : i64, scratch_operands = 2 : i64, tpu.core_type = #tpu.core_type<tc>, window_params = [{transform_indices = @transform_0, window_bounds = array<i64: 16, 64>}, {transform_indices = @transform_1, window_bounds = array<i64: 16, 64>}, {transform_indices = @transform_2, window_bounds = array<i64: 16, 128>}, {transform_indices = @transform_3, window_bounds = array<i64: 2, 16, 16>}, {pipeline_mode = #tpu.pipeline_mode<synchronous>, transform_indices = @transform_4, window_bounds = array<i64: 64, 64>}, {pipeline_mode = #tpu.pipeline_mode<synchronous>, transform_indices = @transform_5, window_bounds = array<i64: 1, 64>}, {pipeline_mode = #tpu.pipeline_mode<synchronous>, transform_indices = @transform_6, window_bounds = array<i64: 1, 64>}, {pipeline_mode = #tpu.pipeline_mode<synchronous>, transform_indices = @transform_7, window_bounds = array<i64: 1, 64>}, {transform_indices = @transform_8, window_bounds = array<i64: 16, 128>}]} {
    %c0_i32 = arith.constant 0 : i32
    %0 = arith.cmpi eq, %arg1, %c0_i32 : i32
    %1 = arith.extui %0 : i1 to i32
    %c0_i32_0 = arith.constant 0 : i32
    %2 = arith.cmpi ne, %1, %c0_i32_0 : i32
    scf.if %2 {
      %cst_96 = arith.constant 0.000000e+00 : f32
      %127 = vector.broadcast %cst_96 : f32 to vector<16x128xf32>
      %c0_97 = arith.constant 0 : index
      %c0_98 = arith.constant 0 : index
      %128 = vector.load %arg11[%c0_97, %c0_98] : memref<16x128xf32, #tpu.memory_space<vmem>>, vector<16x128xf32>
      tpu.vector_store %arg11[%c0_97, %c0_98], %127 {strides = array<i32>} : memref<16x128xf32, #tpu.memory_space<vmem>>, vector<16x128xf32>,
      %cst_99 = arith.constant 0.000000e+00 : f32
      %129 = vector.broadcast %cst_99 : f32 to vector<16x128xf32>
      %c0_100 = arith.constant 0 : index
      %c0_101 = arith.constant 0 : index
      %130 = vector.load %arg12[%c0_100, %c0_101] : memref<16x128xf32, #tpu.memory_space<vmem>>, vector<16x128xf32>
      tpu.vector_store %arg12[%c0_100, %c0_101], %129 {strides = array<i32>} : memref<16x128xf32, #tpu.memory_space<vmem>>, vector<16x128xf32>,
    } else {
    }
    %c0 = arith.constant 0 : index
    %c0_1 = arith.constant 0 : index
    %3 = vector.load %arg2[%c0, %c0_1] : memref<16x64xbf16, #tpu.memory_space<vmem>>, vector<16x64xbf16>
    %c0_2 = arith.constant 0 : index
    %c0_3 = arith.constant 0 : index
    %4 = vector.load %arg4[%c0_2, %c0_3] : memref<16x128xbf16, #tpu.memory_space<vmem>>, vector<16x128xbf16>
    %c0_4 = arith.constant 0 : index
    %c0_5 = arith.constant 0 : index
    %c0_6 = arith.constant 0 : index
    %5 = vector.load %arg5[%c0_4, %c0_5, %c0_6] : memref<2x16x16xi8, #tpu.memory_space<vmem>>, vector<1x16x16xi8>
    %6 = vector.shape_cast %5 : vector<1x16x16xi8> to vector<16x16xi8>
    %7 = arith.sitofp %6 : vector<16x16xi8> to vector<16x16xbf16>
    %c1 = arith.constant 1 : index
    %c0_7 = arith.constant 0 : index
    %c0_8 = arith.constant 0 : index
    %8 = vector.load %arg5[%c1, %c0_7, %c0_8] : memref<2x16x16xi8, #tpu.memory_space<vmem>>, vector<1x16x16xi8>
    %9 = vector.shape_cast %8 : vector<1x16x16xi8> to vector<16x16xi8>
    %10 = arith.sitofp %9 : vector<16x16xi8> to vector<16x16xbf16>
    %cst = arith.constant 1.000000e+00 : bf16
    %11 = vector.broadcast %cst : bf16 to vector<16x16xbf16>
    %12 = vector.extract_strided_slice %3 {offsets = [0, 0], sizes = [16, 16], strides = [1, 1]} : vector<16x64xbf16> to vector<16x16xbf16>
    %13 = vector.extract_strided_slice %4 {offsets = [0, 0], sizes = [16, 16], strides = [1, 1]} : vector<16x128xbf16> to vector<16x16xbf16>
    %14 = vector.extract_strided_slice %4 {offsets = [0, 64], sizes = [16, 16], strides = [1, 1]} : vector<16x128xbf16> to vector<16x16xbf16>
    %cst_9 = arith.constant dense<0.000000e+00> : vector<16x16xf32>
    %15 = tpu.matmul %12, %13, %cst_9 {dimension_numbers = #tpu.dot_dimension_numbers<[1], [1], [0], [0], [0, 0, 1, 0], [], []>} : vector<16x16xbf16>, vector<16x16xbf16>, vector<16x16xf32> -> vector<16x16xf32>
    %cst_10 = arith.constant -5.000000e+00 : f32
    %cst_11 = arith.constant 5.000000e+00 : f32
    %16 = vector.broadcast %cst_10 : f32 to vector<16x16xf32>
    %17 = arith.maximumf %16, %15 : vector<16x16xf32>
    %18 = vector.broadcast %cst_11 : f32 to vector<16x16xf32>
    %19 = arith.minimumf %18, %17 : vector<16x16xf32>
    %20 = math.exp %19 : vector<16x16xf32>
    %21 = arith.truncf %20 : vector<16x16xf32> to vector<16x16xbf16>
    %22 = arith.mulf %21, %7 : vector<16x16xbf16>
    %c0_12 = arith.constant 0 : index
    %c0_13 = arith.constant 0 : index
    %23 = vector.load %arg11[%c0_12, %c0_13] : memref<16x128xf32, #tpu.memory_space<vmem>>, vector<16x16xf32>
    %cst_14 = arith.constant dense<0.000000e+00> : vector<16x16xf32>
    %24 = tpu.matmul %22, %14, %cst_14 {dimension_numbers = #tpu.dot_dimension_numbers<[1], [0], [0], [1], [0, 0, 1, 1], [], []>} : vector<16x16xbf16>, vector<16x16xbf16>, vector<16x16xf32> -> vector<16x16xf32>
    %25 = arith.addf %23, %24 : vector<16x16xf32>
    %c0_15 = arith.constant 0 : index
    %c0_16 = arith.constant 0 : index
    %26 = vector.load %arg11[%c0_15, %c0_16] : memref<16x128xf32, #tpu.memory_space<vmem>>, vector<16x16xf32>
    tpu.vector_store %arg11[%c0_15, %c0_16], %25 {strides = array<i32>} : memref<16x128xf32, #tpu.memory_space<vmem>>, vector<16x16xf32>,
    %c0_17 = arith.constant 0 : index
    %c0_18 = arith.constant 0 : index
    %27 = vector.load %arg12[%c0_17, %c0_18] : memref<16x128xf32, #tpu.memory_space<vmem>>, vector<16x16xf32>
    %cst_19 = arith.constant dense<0.000000e+00> : vector<16x16xf32>
    %28 = tpu.matmul %22, %11, %cst_19 {dimension_numbers = #tpu.dot_dimension_numbers<[1], [0], [0], [1], [0, 0, 1, 1], [], []>} : vector<16x16xbf16>, vector<16x16xbf16>, vector<16x16xf32> -> vector<16x16xf32>
    %29 = arith.addf %27, %28 : vector<16x16xf32>
    %c0_20 = arith.constant 0 : index
    %c0_21 = arith.constant 0 : index
    %30 = vector.load %arg12[%c0_20, %c0_21] : memref<16x128xf32, #tpu.memory_space<vmem>>, vector<16x16xf32>
    tpu.vector_store %arg12[%c0_20, %c0_21], %29 {strides = array<i32>} : memref<16x128xf32, #tpu.memory_space<vmem>>, vector<16x16xf32>,
    %31 = arith.mulf %21, %10 : vector<16x16xbf16>
    %c0_22 = arith.constant 0 : index
    %c64 = arith.constant 64 : index
    %32 = vector.load %arg11[%c0_22, %c64] : memref<16x128xf32, #tpu.memory_space<vmem>>, vector<16x16xf32>
    %cst_23 = arith.constant dense<0.000000e+00> : vector<16x16xf32>
    %33 = tpu.matmul %31, %14, %cst_23 {dimension_numbers = #tpu.dot_dimension_numbers<[1], [0], [0], [1], [0, 0, 1, 1], [], []>} : vector<16x16xbf16>, vector<16x16xbf16>, vector<16x16xf32> -> vector<16x16xf32>
    %34 = arith.addf %32, %33 : vector<16x16xf32>
    %c0_24 = arith.constant 0 : index
    %c64_25 = arith.constant 64 : index
    %35 = vector.load %arg11[%c0_24, %c64_25] : memref<16x128xf32, #tpu.memory_space<vmem>>, vector<16x16xf32>
    tpu.vector_store %arg11[%c0_24, %c64_25], %34 {strides = array<i32>} : memref<16x128xf32, #tpu.memory_space<vmem>>, vector<16x16xf32>,
    %c0_26 = arith.constant 0 : index
    %c64_27 = arith.constant 64 : index
    %36 = vector.load %arg12[%c0_26, %c64_27] : memref<16x128xf32, #tpu.memory_space<vmem>>, vector<16x16xf32>
    %cst_28 = arith.constant dense<0.000000e+00> : vector<16x16xf32>
    %37 = tpu.matmul %31, %11, %cst_28 {dimension_numbers = #tpu.dot_dimension_numbers<[1], [0], [0], [1], [0, 0, 1, 1], [], []>} : vector<16x16xbf16>, vector<16x16xbf16>, vector<16x16xf32> -> vector<16x16xf32>
    %38 = arith.addf %36, %37 : vector<16x16xf32>
    %c0_29 = arith.constant 0 : index
    %c64_30 = arith.constant 64 : index
    %39 = vector.load %arg12[%c0_29, %c64_30] : memref<16x128xf32, #tpu.memory_space<vmem>>, vector<16x16xf32>
    tpu.vector_store %arg12[%c0_29, %c64_30], %38 {strides = array<i32>} : memref<16x128xf32, #tpu.memory_space<vmem>>, vector<16x16xf32>,
    %40 = vector.extract_strided_slice %3 {offsets = [0, 16], sizes = [16, 16], strides = [1, 1]} : vector<16x64xbf16> to vector<16x16xbf16>
    %41 = vector.extract_strided_slice %4 {offsets = [0, 16], sizes = [16, 16], strides = [1, 1]} : vector<16x128xbf16> to vector<16x16xbf16>
    %42 = vector.extract_strided_slice %4 {offsets = [0, 80], sizes = [16, 16], strides = [1, 1]} : vector<16x128xbf16> to vector<16x16xbf16>
    %cst_31 = arith.constant dense<0.000000e+00> : vector<16x16xf32>
    %43 = tpu.matmul %40, %41, %cst_31 {dimension_numbers = #tpu.dot_dimension_numbers<[1], [1], [0], [0], [0, 0, 1, 0], [], []>} : vector<16x16xbf16>, vector<16x16xbf16>, vector<16x16xf32> -> vector<16x16xf32>
    %cst_32 = arith.constant -5.000000e+00 : f32
    %cst_33 = arith.constant 5.000000e+00 : f32
    %44 = vector.broadcast %cst_32 : f32 to vector<16x16xf32>
    %45 = arith.maximumf %44, %43 : vector<16x16xf32>
    %46 = vector.broadcast %cst_33 : f32 to vector<16x16xf32>
    %47 = arith.minimumf %46, %45 : vector<16x16xf32>
    %48 = math.exp %47 : vector<16x16xf32>
    %49 = arith.truncf %48 : vector<16x16xf32> to vector<16x16xbf16>
    %50 = arith.mulf %49, %7 : vector<16x16xbf16>
    %c0_34 = arith.constant 0 : index
    %c16 = arith.constant 16 : index
    %51 = vector.load %arg11[%c0_34, %c16] : memref<16x128xf32, #tpu.memory_space<vmem>>, vector<16x16xf32>
    %cst_35 = arith.constant dense<0.000000e+00> : vector<16x16xf32>
    %52 = tpu.matmul %50, %42, %cst_35 {dimension_numbers = #tpu.dot_dimension_numbers<[1], [0], [0], [1], [0, 0, 1, 1], [], []>} : vector<16x16xbf16>, vector<16x16xbf16>, vector<16x16xf32> -> vector<16x16xf32>
    %53 = arith.addf %51, %52 : vector<16x16xf32>
    %c0_36 = arith.constant 0 : index
    %c16_37 = arith.constant 16 : index
    %54 = vector.load %arg11[%c0_36, %c16_37] : memref<16x128xf32, #tpu.memory_space<vmem>>, vector<16x16xf32>
    tpu.vector_store %arg11[%c0_36, %c16_37], %53 {strides = array<i32>} : memref<16x128xf32, #tpu.memory_space<vmem>>, vector<16x16xf32>,
    %c0_38 = arith.constant 0 : index
    %c16_39 = arith.constant 16 : index
    %55 = vector.load %arg12[%c0_38, %c16_39] : memref<16x128xf32, #tpu.memory_space<vmem>>, vector<16x16xf32>
    %cst_40 = arith.constant dense<0.000000e+00> : vector<16x16xf32>
    %56 = tpu.matmul %50, %11, %cst_40 {dimension_numbers = #tpu.dot_dimension_numbers<[1], [0], [0], [1], [0, 0, 1, 1], [], []>} : vector<16x16xbf16>, vector<16x16xbf16>, vector<16x16xf32> -> vector<16x16xf32>
    %57 = arith.addf %55, %56 : vector<16x16xf32>
    %c0_41 = arith.constant 0 : index
    %c16_42 = arith.constant 16 : index
    %58 = vector.load %arg12[%c0_41, %c16_42] : memref<16x128xf32, #tpu.memory_space<vmem>>, vector<16x16xf32>
    tpu.vector_store %arg12[%c0_41, %c16_42], %57 {strides = array<i32>} : memref<16x128xf32, #tpu.memory_space<vmem>>, vector<16x16xf32>,
    %59 = arith.mulf %49, %10 : vector<16x16xbf16>
    %c0_43 = arith.constant 0 : index
    %c80 = arith.constant 80 : index
    %60 = vector.load %arg11[%c0_43, %c80] : memref<16x128xf32, #tpu.memory_space<vmem>>, vector<16x16xf32>
    %cst_44 = arith.constant dense<0.000000e+00> : vector<16x16xf32>
    %61 = tpu.matmul %59, %42, %cst_44 {dimension_numbers = #tpu.dot_dimension_numbers<[1], [0], [0], [1], [0, 0, 1, 1], [], []>} : vector<16x16xbf16>, vector<16x16xbf16>, vector<16x16xf32> -> vector<16x16xf32>
    %62 = arith.addf %60, %61 : vector<16x16xf32>
    %c0_45 = arith.constant 0 : index
    %c80_46 = arith.constant 80 : index
    %63 = vector.load %arg11[%c0_45, %c80_46] : memref<16x128xf32, #tpu.memory_space<vmem>>, vector<16x16xf32>
    tpu.vector_store %arg11[%c0_45, %c80_46], %62 {strides = array<i32>} : memref<16x128xf32, #tpu.memory_space<vmem>>, vector<16x16xf32>,
    %c0_47 = arith.constant 0 : index
    %c80_48 = arith.constant 80 : index
    %64 = vector.load %arg12[%c0_47, %c80_48] : memref<16x128xf32, #tpu.memory_space<vmem>>, vector<16x16xf32>
    %cst_49 = arith.constant dense<0.000000e+00> : vector<16x16xf32>
    %65 = tpu.matmul %59, %11, %cst_49 {dimension_numbers = #tpu.dot_dimension_numbers<[1], [0], [0], [1], [0, 0, 1, 1], [], []>} : vector<16x16xbf16>, vector<16x16xbf16>, vector<16x16xf32> -> vector<16x16xf32>
    %66 = arith.addf %64, %65 : vector<16x16xf32>
    %c0_50 = arith.constant 0 : index
    %c80_51 = arith.constant 80 : index
    %67 = vector.load %arg12[%c0_50, %c80_51] : memref<16x128xf32, #tpu.memory_space<vmem>>, vector<16x16xf32>
    tpu.vector_store %arg12[%c0_50, %c80_51], %66 {strides = array<i32>} : memref<16x128xf32, #tpu.memory_space<vmem>>, vector<16x16xf32>,
    %68 = vector.extract_strided_slice %3 {offsets = [0, 32], sizes = [16, 16], strides = [1, 1]} : vector<16x64xbf16> to vector<16x16xbf16>
    %69 = vector.extract_strided_slice %4 {offsets = [0, 32], sizes = [16, 16], strides = [1, 1]} : vector<16x128xbf16> to vector<16x16xbf16>
    %70 = vector.extract_strided_slice %4 {offsets = [0, 96], sizes = [16, 16], strides = [1, 1]} : vector<16x128xbf16> to vector<16x16xbf16>
    %cst_52 = arith.constant dense<0.000000e+00> : vector<16x16xf32>
    %71 = tpu.matmul %68, %69, %cst_52 {dimension_numbers = #tpu.dot_dimension_numbers<[1], [1], [0], [0], [0, 0, 1, 0], [], []>} : vector<16x16xbf16>, vector<16x16xbf16>, vector<16x16xf32> -> vector<16x16xf32>
    %cst_53 = arith.constant -5.000000e+00 : f32
    %cst_54 = arith.constant 5.000000e+00 : f32
    %72 = vector.broadcast %cst_53 : f32 to vector<16x16xf32>
    %73 = arith.maximumf %72, %71 : vector<16x16xf32>
    %74 = vector.broadcast %cst_54 : f32 to vector<16x16xf32>
    %75 = arith.minimumf %74, %73 : vector<16x16xf32>
    %76 = math.exp %75 : vector<16x16xf32>
    %77 = arith.truncf %76 : vector<16x16xf32> to vector<16x16xbf16>
    %78 = arith.mulf %77, %7 : vector<16x16xbf16>
    %c0_55 = arith.constant 0 : index
    %c32 = arith.constant 32 : index
    %79 = vector.load %arg11[%c0_55, %c32] : memref<16x128xf32, #tpu.memory_space<vmem>>, vector<16x16xf32>
    %cst_56 = arith.constant dense<0.000000e+00> : vector<16x16xf32>
    %80 = tpu.matmul %78, %70, %cst_56 {dimension_numbers = #tpu.dot_dimension_numbers<[1], [0], [0], [1], [0, 0, 1, 1], [], []>} : vector<16x16xbf16>, vector<16x16xbf16>, vector<16x16xf32> -> vector<16x16xf32>
    %81 = arith.addf %79, %80 : vector<16x16xf32>
    %c0_57 = arith.constant 0 : index
    %c32_58 = arith.constant 32 : index
    %82 = vector.load %arg11[%c0_57, %c32_58] : memref<16x128xf32, #tpu.memory_space<vmem>>, vector<16x16xf32>
    tpu.vector_store %arg11[%c0_57, %c32_58], %81 {strides = array<i32>} : memref<16x128xf32, #tpu.memory_space<vmem>>, vector<16x16xf32>,
    %c0_59 = arith.constant 0 : index
    %c32_60 = arith.constant 32 : index
    %83 = vector.load %arg12[%c0_59, %c32_60] : memref<16x128xf32, #tpu.memory_space<vmem>>, vector<16x16xf32>
    %cst_61 = arith.constant dense<0.000000e+00> : vector<16x16xf32>
    %84 = tpu.matmul %78, %11, %cst_61 {dimension_numbers = #tpu.dot_dimension_numbers<[1], [0], [0], [1], [0, 0, 1, 1], [], []>} : vector<16x16xbf16>, vector<16x16xbf16>, vector<16x16xf32> -> vector<16x16xf32>
    %85 = arith.addf %83, %84 : vector<16x16xf32>
    %c0_62 = arith.constant 0 : index
    %c32_63 = arith.constant 32 : index
    %86 = vector.load %arg12[%c0_62, %c32_63] : memref<16x128xf32, #tpu.memory_space<vmem>>, vector<16x16xf32>
    tpu.vector_store %arg12[%c0_62, %c32_63], %85 {strides = array<i32>} : memref<16x128xf32, #tpu.memory_space<vmem>>, vector<16x16xf32>,
    %87 = arith.mulf %77, %10 : vector<16x16xbf16>
    %c0_64 = arith.constant 0 : index
    %c96 = arith.constant 96 : index
    %88 = vector.load %arg11[%c0_64, %c96] : memref<16x128xf32, #tpu.memory_space<vmem>>, vector<16x16xf32>
    %cst_65 = arith.constant dense<0.000000e+00> : vector<16x16xf32>
    %89 = tpu.matmul %87, %70, %cst_65 {dimension_numbers = #tpu.dot_dimension_numbers<[1], [0], [0], [1], [0, 0, 1, 1], [], []>} : vector<16x16xbf16>, vector<16x16xbf16>, vector<16x16xf32> -> vector<16x16xf32>
    %90 = arith.addf %88, %89 : vector<16x16xf32>
    %c0_66 = arith.constant 0 : index
    %c96_67 = arith.constant 96 : index
    %91 = vector.load %arg11[%c0_66, %c96_67] : memref<16x128xf32, #tpu.memory_space<vmem>>, vector<16x16xf32>
    tpu.vector_store %arg11[%c0_66, %c96_67], %90 {strides = array<i32>} : memref<16x128xf32, #tpu.memory_space<vmem>>, vector<16x16xf32>,
    %c0_68 = arith.constant 0 : index
    %c96_69 = arith.constant 96 : index
    %92 = vector.load %arg12[%c0_68, %c96_69] : memref<16x128xf32, #tpu.memory_space<vmem>>, vector<16x16xf32>
    %cst_70 = arith.constant dense<0.000000e+00> : vector<16x16xf32>
    %93 = tpu.matmul %87, %11, %cst_70 {dimension_numbers = #tpu.dot_dimension_numbers<[1], [0], [0], [1], [0, 0, 1, 1], [], []>} : vector<16x16xbf16>, vector<16x16xbf16>, vector<16x16xf32> -> vector<16x16xf32>
    %94 = arith.addf %92, %93 : vector<16x16xf32>
    %c0_71 = arith.constant 0 : index
    %c96_72 = arith.constant 96 : index
    %95 = vector.load %arg12[%c0_71, %c96_72] : memref<16x128xf32, #tpu.memory_space<vmem>>, vector<16x16xf32>
    tpu.vector_store %arg12[%c0_71, %c96_72], %94 {strides = array<i32>} : memref<16x128xf32, #tpu.memory_space<vmem>>, vector<16x16xf32>,
    %96 = vector.extract_strided_slice %3 {offsets = [0, 48], sizes = [16, 16], strides = [1, 1]} : vector<16x64xbf16> to vector<16x16xbf16>
    %97 = vector.extract_strided_slice %4 {offsets = [0, 48], sizes = [16, 16], strides = [1, 1]} : vector<16x128xbf16> to vector<16x16xbf16>
    %98 = vector.extract_strided_slice %4 {offsets = [0, 112], sizes = [16, 16], strides = [1, 1]} : vector<16x128xbf16> to vector<16x16xbf16>
    %cst_73 = arith.constant dense<0.000000e+00> : vector<16x16xf32>
    %99 = tpu.matmul %96, %97, %cst_73 {dimension_numbers = #tpu.dot_dimension_numbers<[1], [1], [0], [0], [0, 0, 1, 0], [], []>} : vector<16x16xbf16>, vector<16x16xbf16>, vector<16x16xf32> -> vector<16x16xf32>
    %cst_74 = arith.constant -5.000000e+00 : f32
    %cst_75 = arith.constant 5.000000e+00 : f32
    %100 = vector.broadcast %cst_74 : f32 to vector<16x16xf32>
    %101 = arith.maximumf %100, %99 : vector<16x16xf32>
    %102 = vector.broadcast %cst_75 : f32 to vector<16x16xf32>
    %103 = arith.minimumf %102, %101 : vector<16x16xf32>
    %104 = math.exp %103 : vector<16x16xf32>
    %105 = arith.truncf %104 : vector<16x16xf32> to vector<16x16xbf16>
    %106 = arith.mulf %105, %7 : vector<16x16xbf16>
    %c0_76 = arith.constant 0 : index
    %c48 = arith.constant 48 : index
    %107 = vector.load %arg11[%c0_76, %c48] : memref<16x128xf32, #tpu.memory_space<vmem>>, vector<16x16xf32>
    %cst_77 = arith.constant dense<0.000000e+00> : vector<16x16xf32>
    %108 = tpu.matmul %106, %98, %cst_77 {dimension_numbers = #tpu.dot_dimension_numbers<[1], [0], [0], [1], [0, 0, 1, 1], [], []>} : vector<16x16xbf16>, vector<16x16xbf16>, vector<16x16xf32> -> vector<16x16xf32>
    %109 = arith.addf %107, %108 : vector<16x16xf32>
    %c0_78 = arith.constant 0 : index
    %c48_79 = arith.constant 48 : index
    %110 = vector.load %arg11[%c0_78, %c48_79] : memref<16x128xf32, #tpu.memory_space<vmem>>, vector<16x16xf32>
    tpu.vector_store %arg11[%c0_78, %c48_79], %109 {strides = array<i32>} : memref<16x128xf32, #tpu.memory_space<vmem>>, vector<16x16xf32>,
    %c0_80 = arith.constant 0 : index
    %c48_81 = arith.constant 48 : index
    %111 = vector.load %arg12[%c0_80, %c48_81] : memref<16x128xf32, #tpu.memory_space<vmem>>, vector<16x16xf32>
    %cst_82 = arith.constant dense<0.000000e+00> : vector<16x16xf32>
    %112 = tpu.matmul %106, %11, %cst_82 {dimension_numbers = #tpu.dot_dimension_numbers<[1], [0], [0], [1], [0, 0, 1, 1], [], []>} : vector<16x16xbf16>, vector<16x16xbf16>, vector<16x16xf32> -> vector<16x16xf32>
    %113 = arith.addf %111, %112 : vector<16x16xf32>
    %c0_83 = arith.constant 0 : index
    %c48_84 = arith.constant 48 : index
    %114 = vector.load %arg12[%c0_83, %c48_84] : memref<16x128xf32, #tpu.memory_space<vmem>>, vector<16x16xf32>
    tpu.vector_store %arg12[%c0_83, %c48_84], %113 {strides = array<i32>} : memref<16x128xf32, #tpu.memory_space<vmem>>, vector<16x16xf32>,
    %115 = arith.mulf %105, %10 : vector<16x16xbf16>
    %c0_85 = arith.constant 0 : index
    %c112 = arith.constant 112 : index
    %116 = vector.load %arg11[%c0_85, %c112] : memref<16x128xf32, #tpu.memory_space<vmem>>, vector<16x16xf32>
    %cst_86 = arith.constant dense<0.000000e+00> : vector<16x16xf32>
    %117 = tpu.matmul %115, %98, %cst_86 {dimension_numbers = #tpu.dot_dimension_numbers<[1], [0], [0], [1], [0, 0, 1, 1], [], []>} : vector<16x16xbf16>, vector<16x16xbf16>, vector<16x16xf32> -> vector<16x16xf32>
    %118 = arith.addf %116, %117 : vector<16x16xf32>
    %c0_87 = arith.constant 0 : index
    %c112_88 = arith.constant 112 : index
    %119 = vector.load %arg11[%c0_87, %c112_88] : memref<16x128xf32, #tpu.memory_space<vmem>>, vector<16x16xf32>
    tpu.vector_store %arg11[%c0_87, %c112_88], %118 {strides = array<i32>} : memref<16x128xf32, #tpu.memory_space<vmem>>, vector<16x16xf32>,
    %c0_89 = arith.constant 0 : index
    %c112_90 = arith.constant 112 : index
    %120 = vector.load %arg12[%c0_89, %c112_90] : memref<16x128xf32, #tpu.memory_space<vmem>>, vector<16x16xf32>
    %cst_91 = arith.constant dense<0.000000e+00> : vector<16x16xf32>
    %121 = tpu.matmul %115, %11, %cst_91 {dimension_numbers = #tpu.dot_dimension_numbers<[1], [0], [0], [1], [0, 0, 1, 1], [], []>} : vector<16x16xbf16>, vector<16x16xbf16>, vector<16x16xf32> -> vector<16x16xf32>
    %122 = arith.addf %120, %121 : vector<16x16xf32>
    %c0_92 = arith.constant 0 : index
    %c112_93 = arith.constant 112 : index
    %123 = vector.load %arg12[%c0_92, %c112_93] : memref<16x128xf32, #tpu.memory_space<vmem>>, vector<16x16xf32>
    tpu.vector_store %arg12[%c0_92, %c112_93], %122 {strides = array<i32>} : memref<16x128xf32, #tpu.memory_space<vmem>>, vector<16x16xf32>,
    %c0_i32_94 = arith.constant 0 : i32
    %124 = arith.cmpi eq, %arg1, %c0_i32_94 : i32
    %125 = arith.extui %124 : i1 to i32
    %c0_i32_95 = arith.constant 0 : i32
    %126 = arith.cmpi ne, %125, %c0_i32_95 : i32
    scf.if %126 {
      %c0_96 = arith.constant 0 : index
      %c0_97 = arith.constant 0 : index
      %127 = vector.load %arg3[%c0_96, %c0_97] : memref<16x64xf32, #tpu.memory_space<vmem>>, vector<16x64xf32>
      %c0_98 = arith.constant 0 : index
      %c0_99 = arith.constant 0 : index
      %128 = vector.load %arg6[%c0_98, %c0_99] : memref<64x64xf32, #tpu.memory_space<vmem>>, vector<64x64xf32>
      %c0_100 = arith.constant 0 : index
      %c0_101 = arith.constant 0 : index
      %129 = vector.load %arg7[%c0_100, %c0_101] : memref<1x64xf32, #tpu.memory_space<vmem>>, vector<1x64xf32>
      %c0_102 = arith.constant 0 : index
      %c0_103 = arith.constant 0 : index
      %130 = vector.load %arg8[%c0_102, %c0_103] : memref<1x64xf32, #tpu.memory_space<vmem>>, vector<1x64xf32>
      %c0_104 = arith.constant 0 : index
      %c0_105 = arith.constant 0 : index
      %131 = vector.load %arg9[%c0_104, %c0_105] : memref<1x64xf32, #tpu.memory_space<vmem>>, vector<1x64xf32>
      %c0_106 = arith.constant 0 : index
      %c0_107 = arith.constant 0 : index
      %132 = vector.load %arg11[%c0_106, %c0_107] : memref<16x128xf32, #tpu.memory_space<vmem>>, vector<16x64xf32>
      %c0_108 = arith.constant 0 : index
      %c0_109 = arith.constant 0 : index
      %133 = vector.load %arg12[%c0_108, %c0_109] : memref<16x128xf32, #tpu.memory_space<vmem>>, vector<16x64xf32>
      %cst_110 = arith.constant 1.000000e+00 : f32
      %134 = vector.broadcast %cst_110 : f32 to vector<16x64xf32>
      %135 = arith.addf %133, %134 : vector<16x64xf32>
      %136 = arith.divf %132, %135 : vector<16x64xf32>
      %cst_111 = arith.constant dense<0.000000e+00> : vector<16x64xf32>
      %137 = tpu.matmul %136, %128, %cst_111 {dimension_numbers = #tpu.dot_dimension_numbers<[1], [0], [0], [1], [0, 0, 1, 1], [], []>} : vector<16x64xf32>, vector<64x64xf32>, vector<16x64xf32> -> vector<16x64xf32>
      %138 = vector.broadcast %129 : vector<1x64xf32> to vector<16x64xf32>
      %139 = arith.addf %137, %138 : vector<16x64xf32>
      %140 = arith.addf %127, %139 : vector<16x64xf32>
      %cst_112 = arith.constant dense<0.000000e+00> : vector<16xf32>
      %141 = vector.multi_reduction <add>, %140, %cst_112 [1] : vector<16x64xf32> to vector<16xf32>
      %142 = vector.shape_cast %141 : vector<16xf32> to vector<16x1xf32>
      %cst_113 = arith.constant 6.400000e+01 : f32
      %143 = vector.broadcast %cst_113 : f32 to vector<16x1xf32>
      %144 = arith.divf %142, %143 : vector<16x1xf32>
      %145 = vector.broadcast %144 : vector<16x1xf32> to vector<16x64xf32>
      %146 = arith.subf %140, %145 : vector<16x64xf32>
      %147 = arith.mulf %146, %146 : vector<16x64xf32>
      %cst_114 = arith.constant dense<0.000000e+00> : vector<16xf32>
      %148 = vector.multi_reduction <add>, %147, %cst_114 [1] : vector<16x64xf32> to vector<16xf32>
      %149 = vector.shape_cast %148 : vector<16xf32> to vector<16x1xf32>
      %cst_115 = arith.constant 6.400000e+01 : f32
      %150 = vector.broadcast %cst_115 : f32 to vector<16x1xf32>
      %151 = arith.divf %149, %150 : vector<16x1xf32>
      %152 = vector.broadcast %144 : vector<16x1xf32> to vector<16x64xf32>
      %153 = arith.subf %140, %152 : vector<16x64xf32>
      %cst_116 = arith.constant 9.99999974E-6 : f32
      %154 = vector.broadcast %cst_116 : f32 to vector<16x1xf32>
      %155 = arith.addf %151, %154 : vector<16x1xf32>
      %156 = math.rsqrt %155 : vector<16x1xf32>
      %157 = vector.broadcast %156 : vector<16x1xf32> to vector<16x64xf32>
      %158 = arith.mulf %153, %157 : vector<16x64xf32>
      %159 = vector.broadcast %130 : vector<1x64xf32> to vector<16x64xf32>
      %160 = arith.mulf %158, %159 : vector<16x64xf32>
      %161 = vector.broadcast %131 : vector<1x64xf32> to vector<16x64xf32>
      %162 = arith.addf %160, %161 : vector<16x64xf32>
      %163 = arith.addf %140, %162 : vector<16x64xf32>
      %c0_117 = arith.constant 0 : index
      %c64_118 = arith.constant 64 : index
      %164 = vector.load %arg11[%c0_117, %c64_118] : memref<16x128xf32, #tpu.memory_space<vmem>>, vector<16x64xf32>
      %c0_119 = arith.constant 0 : index
      %c64_120 = arith.constant 64 : index
      %165 = vector.load %arg12[%c0_119, %c64_120] : memref<16x128xf32, #tpu.memory_space<vmem>>, vector<16x64xf32>
      %cst_121 = arith.constant 1.000000e+00 : f32
      %166 = vector.broadcast %cst_121 : f32 to vector<16x64xf32>
      %167 = arith.addf %165, %166 : vector<16x64xf32>
      %168 = arith.divf %164, %167 : vector<16x64xf32>
      %cst_122 = arith.constant dense<0.000000e+00> : vector<16x64xf32>
      %169 = tpu.matmul %168, %128, %cst_122 {dimension_numbers = #tpu.dot_dimension_numbers<[1], [0], [0], [1], [0, 0, 1, 1], [], []>} : vector<16x64xf32>, vector<64x64xf32>, vector<16x64xf32> -> vector<16x64xf32>
      %170 = vector.broadcast %129 : vector<1x64xf32> to vector<16x64xf32>
      %171 = arith.addf %169, %170 : vector<16x64xf32>
      %172 = arith.addf %127, %171 : vector<16x64xf32>
      %cst_123 = arith.constant dense<0.000000e+00> : vector<16xf32>
      %173 = vector.multi_reduction <add>, %172, %cst_123 [1] : vector<16x64xf32> to vector<16xf32>
      %174 = vector.shape_cast %173 : vector<16xf32> to vector<16x1xf32>
      %cst_124 = arith.constant 6.400000e+01 : f32
      %175 = vector.broadcast %cst_124 : f32 to vector<16x1xf32>
      %176 = arith.divf %174, %175 : vector<16x1xf32>
      %177 = vector.broadcast %176 : vector<16x1xf32> to vector<16x64xf32>
      %178 = arith.subf %172, %177 : vector<16x64xf32>
      %179 = arith.mulf %178, %178 : vector<16x64xf32>
      %cst_125 = arith.constant dense<0.000000e+00> : vector<16xf32>
      %180 = vector.multi_reduction <add>, %179, %cst_125 [1] : vector<16x64xf32> to vector<16xf32>
      %181 = vector.shape_cast %180 : vector<16xf32> to vector<16x1xf32>
      %cst_126 = arith.constant 6.400000e+01 : f32
      %182 = vector.broadcast %cst_126 : f32 to vector<16x1xf32>
      %183 = arith.divf %181, %182 : vector<16x1xf32>
      %184 = vector.broadcast %176 : vector<16x1xf32> to vector<16x64xf32>
      %185 = arith.subf %172, %184 : vector<16x64xf32>
      %cst_127 = arith.constant 9.99999974E-6 : f32
      %186 = vector.broadcast %cst_127 : f32 to vector<16x1xf32>
      %187 = arith.addf %183, %186 : vector<16x1xf32>
      %188 = math.rsqrt %187 : vector<16x1xf32>
      %189 = vector.broadcast %188 : vector<16x1xf32> to vector<16x64xf32>
      %190 = arith.mulf %185, %189 : vector<16x64xf32>
      %191 = vector.broadcast %130 : vector<1x64xf32> to vector<16x64xf32>
      %192 = arith.mulf %190, %191 : vector<16x64xf32>
      %193 = vector.broadcast %131 : vector<1x64xf32> to vector<16x64xf32>
      %194 = arith.addf %192, %193 : vector<16x64xf32>
      %195 = arith.addf %172, %194 : vector<16x64xf32>
      %196 = tpu.concatenate %163, %195 in 1 : vector<16x64xf32>, vector<16x64xf32> -> vector<16x128xf32>
      %c0_128 = arith.constant 0 : index
      %c0_129 = arith.constant 0 : index
      %197 = vector.load %arg10[%c0_128, %c0_129] : memref<16x128xf32, #tpu.memory_space<vmem>>, vector<16x128xf32>
      tpu.vector_store %arg10[%c0_128, %c0_129], %196 {strides = array<i32>} : memref<16x128xf32, #tpu.memory_space<vmem>>, vector<16x128xf32>,
    } else {
    }
    return
  }
  func.func @transform_0(%arg0: i32, %arg1: i32) -> (i32, i32) {
    %c0_i32 = arith.constant 0 : i32
    %c0_i32_0 = arith.constant 0 : i32
    return %arg0, %c0_i32 : i32, i32
  }
  func.func @transform_1(%arg0: i32, %arg1: i32) -> (i32, i32) {
    %c0_i32 = arith.constant 0 : i32
    %c0_i32_0 = arith.constant 0 : i32
    return %arg0, %c0_i32 : i32, i32
  }
  func.func @transform_2(%arg0: i32, %arg1: i32) -> (i32, i32) {
    %c0_i32 = arith.constant 0 : i32
    %c0_i32_0 = arith.constant 0 : i32
    return %arg1, %c0_i32 : i32, i32
  }
  func.func @transform_3(%arg0: i32, %arg1: i32) -> (i32, i32, i32) {
    %c0_i32 = arith.constant 0 : i32
    %c0_i32_0 = arith.constant 0 : i32
    return %c0_i32, %arg0, %arg1 : i32, i32, i32
  }
  func.func @transform_4(%arg0: i32, %arg1: i32) -> (i32, i32) {
    %c0_i32 = arith.constant 0 : i32
    %c0_i32_0 = arith.constant 0 : i32
    %c0_i32_1 = arith.constant 0 : i32
    return %c0_i32, %c0_i32_0 : i32, i32
  }
  func.func @transform_5(%arg0: i32, %arg1: i32) -> (i32, i32) {
    %c0_i32 = arith.constant 0 : i32
    %c0_i32_0 = arith.constant 0 : i32
    %c0_i32_1 = arith.constant 0 : i32
    return %c0_i32, %c0_i32_0 : i32, i32
  }
  func.func @transform_6(%arg0: i32, %arg1: i32) -> (i32, i32) {
    %c0_i32 = arith.constant 0 : i32
    %c0_i32_0 = arith.constant 0 : i32
    %c0_i32_1 = arith.constant 0 : i32
    return %c0_i32, %c0_i32_0 : i32, i32
  }
  func.func @transform_7(%arg0: i32, %arg1: i32) -> (i32, i32) {
    %c0_i32 = arith.constant 0 : i32
    %c0_i32_0 = arith.constant 0 : i32
    %c0_i32_1 = arith.constant 0 : i32
    return %c0_i32, %c0_i32_0 : i32, i32
  }
  func.func @transform_8(%arg0: i32, %arg1: i32) -> (i32, i32) {
    %c0_i32 = arith.constant 0 : i32
    %c0_i32_0 = arith.constant 0 : i32
    return %arg0, %c0_i32 : i32, i32
  }
}

</mosaic_0001>

<llo_original>
// kernel: _forward.2
$region0: #{_forward.2}
  #allocation0 [shape = 'u32[]', space=smem, size = 0x4, offset = 0x4, fixed_abs, tag = 'smem constant byte address 0x4 - core index']
  #allocation1 [shape = 'u32[144,128]{1,0:T(1,128)}', space=vmem, size = 0x12000, scoped, tag = 'internal scratch']
  %s0 = inlined_call_operand.hbm [shape: f32[16,64], index: 0, kind: input, shape index: {}]
  %s1 = inlined_call_operand.hbm [shape: f32[64,256], index: 1, kind: input, shape index: {}]
  %s2 = inlined_call_operand.vmem [shape: f32[1,256], index: 2, kind: input, shape index: {}]
  %s3 = inlined_call_operand.vmem [shape: bf16[16,64], index: 3, kind: output, shape index: {0}]
  %s4 = inlined_call_operand.vmem [shape: f32[16,64], index: 4, kind: output, shape index: {1}]
  %s5 = inlined_call_operand.vmem [shape: bf16[16,128], index: 5, kind: output, shape index: {2}]
  %6 = xla_tuple %s3, %s4, %s5
  %s7 = sld [smem:[#allocation0]]
  $region69: #{_forward.2} parent=0
    _
  %s9 = ssub.s32 1, %s7
  %s10 = scalar_select 0, %s9, %s7
  $region1: #{_forward.2} parent=0
    #allocation2 [shape = 'u8[8192]{0}', space=vmem, size = 0x2000, scoped, tag = 'input window, operand 0']
    #allocation3 [shape = 's32[2]{0}', space=sflag, size = 0x8, scoped, tag = 'scoped memory for _forward.2']
    #allocation4 [shape = 'u8[65536]{0}', space=vmem, size = 0x10000, scoped, tag = 'input window, operand 1, single buffered']
    #allocation5 [shape = 's32[1]{0}', space=sflag, size = 0x4, scoped, tag = 'scoped memory for _forward.2']
    %11 = vsyncpa [#allocation3], 0
    %s12 = scalar_lea.sflag [#allocation3], 1
    %13 = vsyncpa %s12, 0
    %14 = vsyncpa [#allocation5], 0
    loop: start=0, step=1, limit=4
    $region2: #{_forward.2} parent=1 // loop_pre_header
      _
    $region3: #{_forward.2} parent=1 // loop_header
      %s16 = sphi 0, %s20
      %p17 = scmp.ge.s32.totalorder %s16, 4
      %s26 = sphi 0, %s28
      %s29 = sphi 0, %s26
      %s30 = sphi 0, %s29
      %s46 = sphi 0, %s30
      %s50 = sphi 0, %s50
      %s52 = sphi 0, %s50
      %s53 = sphi 0, %s52
      %s67 = sphi 0, %s53
      %s71 = sphi 0, %s71
      %s73 = sphi 0, %s71
      %s74 = sphi 0, %s73
      %s88 = sphi 0, %s74
      %s94 = sphi 0, %s96
      %s97 = sphi 0, %s94
      %s98 = sphi 0, %s97
      %s114 = sphi 0, %s98
      %s120 = sphi 0, %s122
      %s123 = sphi 0, %s120
      %s124 = sphi 0, %s123
      %s140 = sphi 0, %s124
      %s146 = sphi 0, %s148
      %s149 = sphi 0, %s146
      %s150 = sphi 0, %s149
      %s166 = sphi 0, %s150
    $region4: #{_forward.2} parent=1 // loop_header_branch
      %19 = sbr.rel (%p17) target = $region8
    $region5: #{_forward.2} parent=1 // loop_body
      %s21 = ssub.s32 %s16, 1
      %s22 = ssub.s32 %s16, 2
      %s23 = sadd.s32 %s16, 1
      %s24 = ssub.s32 %s16, %s23
      %p25 = scmp.eq.s32.totalorder %s24, 0
      %s27 = sadd.s32 %s26, 1
      %s28 = scalar_select %p25, %s26, %s27
      %p31 = pneg %p25
      %p32 = scmp.eq.s32.totalorder %s16, 1
      %p33 = por %p31, %p32
      %p34 = scmp.ne.s32.totalorder %s26, %s29
      %p35 = scmp.eq.s32.totalorder %s16, 0
      %p36 = por %p34, %p35
      %p37 = scmp.ne.s32.totalorder %s26, %s29
      %p38 = scmp.eq.s32.totalorder %s21, 1
      %p39 = por %p37, %p38
      %p40 = scmp.ne.s32.totalorder %s29, %s30
      %p41 = scmp.eq.s32.totalorder %s21, 0
      %p42 = por %p40, %p41
      %p43 = scmp.ne.s32.totalorder %s29, %s30
      %p44 = scmp.eq.s32.totalorder %s22, 1
      %p45 = por %p43, %p44
      %p47 = scmp.ne.s32.totalorder %s30, %s46
      %p48 = scmp.eq.s32.totalorder %s22, 0
      %p49 = por %p47, %p48
      %s51 = sadd.s32 %s50, 1
      %p54 = scmp.eq.s32.totalorder %s16, 1
      %p55 = scmp.ne.s32.totalorder %s50, %s52
      %p56 = scmp.eq.s32.totalorder %s16, 0
      %p57 = por %p55, %p56
      %p58 = scmp.ne.s32.totalorder %s50, %s52
      %p59 = scmp.eq.s32.totalorder %s21, 1
      %p60 = por %p58, %p59
      %p61 = scmp.ne.s32.totalorder %s52, %s53
      %p62 = scmp.eq.s32.totalorder %s21, 0
      %p63 = por %p61, %p62
      %p64 = scmp.ne.s32.totalorder %s52, %s53
      %p65 = scmp.eq.s32.totalorder %s22, 1
      %p66 = por %p64, %p65
      %p68 = scmp.ne.s32.totalorder %s53, %s67
      %p69 = scmp.eq.s32.totalorder %s22, 0
      %p70 = por %p68, %p69
      %s72 = sadd.s32 %s71, 1
      %p75 = scmp.eq.s32.totalorder %s16, 1
      %p76 = scmp.ne.s32.totalorder %s71, %s73
      %p77 = scmp.eq.s32.totalorder %s16, 0
      %p78 = por %p76, %p77
      %p79 = scmp.ne.s32.totalorder %s71, %s73
      %p80 = scmp.eq.s32.totalorder %s21, 1
      %p81 = por %p79, %p80
      %p82 = scmp.ne.s32.totalorder %s73, %s74
      %p83 = scmp.eq.s32.totalorder %s21, 0
      %p84 = por %p82, %p83
      %p85 = scmp.ne.s32.totalorder %s73, %s74
      %p86 = scmp.eq.s32.totalorder %s22, 1
      %p87 = por %p85, %p86
      %p89 = scmp.ne.s32.totalorder %s74, %s88
      %p90 = scmp.eq.s32.totalorder %s22, 0
      %p91 = por %p89, %p90
      %s92 = ssub.s32 %s16, %s23
      %p93 = scmp.eq.s32.totalorder %s92, 0
      %s95 = sadd.s32 %s94, 1
      %s96 = scalar_select %p93, %s94, %s95
      %p99 = pneg %p93
      %p100 = scmp.eq.s32.totalorder %s16, 1
      %p101 = por %p99, %p100
      %p102 = scmp.ne.s32.totalorder %s94, %s97
      %p103 = scmp.eq.s32.totalorder %s16, 0
      %p104 = por %p102, %p103
      %p105 = scmp.ne.s32.totalorder %s94, %s97
      %p106 = scmp.eq.s32.totalorder %s21, 1
      %p107 = por %p105, %p106
      %p108 = scmp.ne.s32.totalorder %s97, %s98
      %p109 = scmp.eq.s32.totalorder %s21, 0
      %p110 = por %p108, %p109
      %p111 = scmp.ne.s32.totalorder %s97, %s98
      %p112 = scmp.eq.s32.totalorder %s22, 1
      %p113 = por %p111, %p112
      %p115 = scmp.ne.s32.totalorder %s98, %s114
      %p116 = scmp.eq.s32.totalorder %s22, 0
      %p117 = por %p115, %p116
      %s118 = ssub.s32 %s16, %s23
      %p119 = scmp.eq.s32.totalorder %s118, 0
      %s121 = sadd.s32 %s120, 1
      %s122 = scalar_select %p119, %s120, %s121
      %p125 = pneg %p119
      %p126 = scmp.eq.s32.totalorder %s16, 1
      %p127 = por %p125, %p126
      %p128 = scmp.ne.s32.totalorder %s120, %s123
      %p129 = scmp.eq.s32.totalorder %s16, 0
      %p130 = por %p128, %p129
      %p131 = scmp.ne.s32.totalorder %s120, %s123
      %p132 = scmp.eq.s32.totalorder %s21, 1
      %p133 = por %p131, %p132
      %p134 = scmp.ne.s32.totalorder %s123, %s124
      %p135 = scmp.eq.s32.totalorder %s21, 0
      %p136 = por %p134, %p135
      %p137 = scmp.ne.s32.totalorder %s123, %s124
      %p138 = scmp.eq.s32.totalorder %s22, 1
      %p139 = por %p137, %p138
      %p141 = scmp.ne.s32.totalorder %s124, %s140
      %p142 = scmp.eq.s32.totalorder %s22, 0
      %p143 = por %p141, %p142
      %s144 = ssub.s32 %s16, %s23
      %p145 = scmp.eq.s32.totalorder %s144, 0
      %s147 = sadd.s32 %s146, 1
      %s148 = scalar_select %p145, %s146, %s147
      %p151 = pneg %p145
      %p152 = scmp.eq.s32.totalorder %s16, 1
      %p153 = por %p151, %p152
      %p154 = scmp.ne.s32.totalorder %s146, %s149
      %p155 = scmp.eq.s32.totalorder %s16, 0
      %p156 = por %p154, %p155
      %p157 = scmp.ne.s32.totalorder %s146, %s149
      %p158 = scmp.eq.s32.totalorder %s21, 1
      %p159 = por %p157, %p158
      %p160 = scmp.ne.s32.totalorder %s149, %s150
      %p161 = scmp.eq.s32.totalorder %s21, 0
      %p162 = por %p160, %p161
      %p163 = scmp.ne.s32.totalorder %s149, %s150
      %p164 = scmp.eq.s32.totalorder %s22, 1
      %p165 = por %p163, %p164
      %p167 = scmp.ne.s32.totalorder %s150, %s166
      %p168 = scmp.eq.s32.totalorder %s22, 0
      %p169 = por %p167, %p168
      %p170 = scmp.le.s32.totalorder 1, %s16
      %p171 = scmp.lt.s32.totalorder %s16, 3
      %p172 = pnand %p170, %p171
      %p173 = pneg %p172
      // Predicated region
      $region9: #{_forward.2} parent=5 // pred_check
        _
      $region10: #{_forward.2} parent=5 // pred_check_branch
        %175 = sbr.rel (%p172) target = $region12
      $region11: #{_forward.2} parent=5 // pred_region
        %s176 = ssub.s32 %s16, 1
        // Predicated region
        $region13: #{_forward.2} parent=11 // pred_check
          %p177 = pneg %p63
        $region14: #{_forward.2} parent=11 // pred_check_branch
          %179 = sbr.rel (%p177) target = $region16
        $region15: #{_forward.2} parent=11 // pred_region
          %s181 = ssub.s32 2048, 2048
          %182 = vsyncadd [#allocation5], %s181
          %s183 = sshll.u32 [#allocation4], 4
          %s184 = int_to_ptr.vmem [resolvable:$true] %s183
          %189 = dma.hbm_to_vmem [thread:$0]  %s1, 2048, %s184, [#allocation5], 256, 256, 16
        $region16: #{_forward.2} parent=11 // pred_fallthru
          _
        // Predicated region
        $region17: #{_forward.2} parent=11 // pred_check
          %p190 = pneg %p84
        $region18: #{_forward.2} parent=11 // pred_check_branch
          %192 = sbr.rel (%p190) target = $region20
        $region19: #{_forward.2} parent=11 // pred_region
          _
        $region20: #{_forward.2} parent=11 // pred_fallthru
          _
      $region12: #{_forward.2} parent=5 // pred_fallthru
        _
      %p193 = scmp.lt.s32.totalorder %s16, 2
      // Predicated region
      $region21: #{_forward.2} parent=5 // pred_check
        %p194 = pneg %p193
      $region22: #{_forward.2} parent=5 // pred_check_branch
        %196 = sbr.rel (%p194) target = $region24
      $region23: #{_forward.2} parent=5 // pred_region
        // Predicated region
        $region25: #{_forward.2} parent=23 // pred_check
          %p197 = pneg %p36
        $region26: #{_forward.2} parent=23 // pred_check_branch
          %199 = sbr.rel (%p197) target = $region28
        $region27: #{_forward.2} parent=23 // pred_region
          %s200 = sand.u32 %s26, 1
          %s201 = scalar_lea.sflag [#allocation3], %s200
          %s202 = sand.u32 %s26, 1
          %s203 = smul.addr %s202, 8
          %s204 = scalar_lea.vmem [#allocation2], %s203
          %s206 = ssub.s32 128, 128
          %207 = vsyncadd %s201, %s206
          %s208 = smul.addr %s16, 128
          %s209 = scalar_lea.hbm %s0, %s208
          %s211 = sshll.u32 %s204, 4
          %s212 = int_to_ptr.vmem [resolvable:$true] %s211
          %214 = dma.hbm_to_vmem [thread:$0]  %s209, 128, %s212, %s201
        $region28: #{_forward.2} parent=23 // pred_fallthru
          _
      $region24: #{_forward.2} parent=5 // pred_fallthru
        _
      %p215 = scmp.le.s32.totalorder 1, %s16
      %p216 = scmp.lt.s32.totalorder %s16, 3
      %p217 = pnand %p215, %p216
      %p218 = pneg %p217
      // Predicated region
      $region29: #{_forward.2} parent=5 // pred_check
        _
      $region30: #{_forward.2} parent=5 // pred_check_branch
        %220 = sbr.rel (%p217) target = $region32
      $region31: #{_forward.2} parent=5 // pred_region
        %s221 = ssub.s32 %s16, 1
        %s222 = sand.u32 %s29, 1
        %s223 = scalar_lea.sflag [#allocation3], %s222
        %s224 = sand.u32 %s29, 1
        %s225 = smul.addr %s224, 8
        %s226 = scalar_lea.vmem [#allocation2], %s225
        // Predicated region
        $region33: #{_forward.2} parent=31 // pred_check
          %p227 = pneg %p42
        $region34: #{_forward.2} parent=31 // pred_check_branch
          %229 = sbr.rel (%p227) target = $region36
        $region35: #{_forward.2} parent=31 // pred_region
          %230 = dma.done %s223, 128
        $region36: #{_forward.2} parent=31 // pred_fallthru
          _
        // Predicated region
        $region37: #{_forward.2} parent=31 // pred_check
          %p231 = pneg %p63
        $region38: #{_forward.2} parent=31 // pred_check_branch
          %233 = sbr.rel (%p231) target = $region40
        $region39: #{_forward.2} parent=31 // pred_region
          %234 = dma.done [#allocation5], 2048
        $region40: #{_forward.2} parent=31 // pred_fallthru
          _
        %s235 = sand.u32 %s29, 1
        %s236 = scalar_lea.sflag [#allocation3], %s235
        %s237 = sand.u32 %s29, 1
        %s238 = smul.addr %s237, 8
        %s239 = scalar_lea.vmem [#allocation2], %s238
        %p240 = pneg %p42
        %p241 = pneg %p39
        %p242 = pneg %p63
        %p243 = pneg %p60
        %p244 = pneg %p84
        %p245 = pneg %p81
        %p246 = pneg %p110
        %p247 = pneg %p107
        %p248 = scmp.lt.s32.totalorder %s21, 1
        %s249 = scalar_select %p248, %s21, 1
        %s250 = smul.addr %s249, 4
        %s251 = scalar_lea.vmem %s3, %s250
        %p252 = pneg %p136
        %p253 = pneg %p133
        %p254 = scmp.lt.s32.totalorder %s21, 1
        %s255 = scalar_select %p254, %s21, 1
        %s256 = smul.addr %s255, 8
        %s257 = scalar_lea.vmem %s4, %s256
        %p258 = pneg %p162
        %p259 = pneg %p159
        %p260 = scmp.lt.s32.totalorder %s21, 1
        %s261 = scalar_select %p260, %s21, 1
        %s262 = smul.addr %s261, 4
        %s263 = scalar_lea.vmem %s5, %s262
        %p264 = scmp.lt.s32.totalorder %s21, 1
        %s265 = scalar_select %p264, %s21, 1
        %s266 = smul.addr %s265, 4
        %s267 = scalar_lea.vmem %s3, %s266
        %p268 = scmp.lt.s32.totalorder %s21, 1
        %s269 = scalar_select %p268, %s21, 1
        %s270 = smul.addr %s269, 8
        %s271 = scalar_lea.vmem %s4, %s270
        %p272 = scmp.lt.s32.totalorder %s21, 1
        %s273 = scalar_select %p272, %s21, 1
        %s274 = smul.addr %s273, 4
        %s275 = scalar_lea.vmem %s5, %s274
        %v276 = vld [vmem:[%s226] sm:$0xff]
        %v277 = vld [vmem:[#allocation4] sm:$0xff]
        %v278 = vld [vmem:[#allocation4 + $0x8] sm:$0xff]
        %v279 = vld [vmem:[#allocation4 + $0x10] sm:$0xff]
        %v280 = vld [vmem:[#allocation4 + $0x18] sm:$0xff]
        %v281 = vld [vmem:[#allocation4 + $0x20] sm:$0xff]
        %v282 = vld [vmem:[#allocation4 + $0x28] sm:$0xff]
        %v283 = vld [vmem:[#allocation4 + $0x30] sm:$0xff]
        %v284 = vld [vmem:[#allocation4 + $0x38] sm:$0xff]
        %v285 = vld [vmem:[#allocation4 + $0x40] sm:$0xff]
        %v286 = vld [vmem:[#allocation4 + $0x48] sm:$0xff]
        %v287 = vld [vmem:[#allocation4 + $0x50] sm:$0xff]
        %v288 = vld [vmem:[#allocation4 + $0x58] sm:$0xff]
        %v289 = vld [vmem:[#allocation4 + $0x60] sm:$0xff]
        %v290 = vld [vmem:[#allocation4 + $0x68] sm:$0xff]
        %v291 = vld [vmem:[#allocation4 + $0x70] sm:$0xff]
        %v292 = vld [vmem:[#allocation4 + $0x78] sm:$0xff]
        %v293 = vld [vmem:[%s2] sm:$0x3]
        %v295 = vlaneseq
        %v296 = vshrl.u32 %v295, 7
        %v297 = vsub.s32 0, %v296
        %v298 = vrot.slane %v293, %v297
        %v299 = vlaneseq
        %v300 = vshrl.u32 %v299, 7
        %v301 = vsub.s32 1, %v300
        %v302 = vrot.slane %v293, %v301
        %vm305 = vcmask 523264
        %v307 = vsel %vm305, %v276, 0
        %309 = vmatprep.subr.mxu0 %v278
        %310 = vmatpush1.msra.mxu0 %v277
        %311 = vmatprep.subr.mxu0 %v280
        %312 = vmatpush1.msra.mxu0 %v279
        %313 = vmatprep.subr.mxu0 %v282
        %314 = vmatpush1.msra.mxu0 %v281
        %315 = vmatprep.subr.mxu0 %v284
        %316 = vmatpush1.msra.mxu0 %v283
        %317 = vmatprep.subr.mxu0 %v286
        %318 = vmatpush1.msra.mxu0 %v285
        %319 = vmatprep.subr.mxu0 %v288
        %320 = vmatpush1.msra.mxu0 %v287
        %321 = vmatprep.subr.mxu0 %v290
        %322 = vmatpush1.msra.mxu0 %v289
        %323 = vmatprep.subr.mxu0 %v292
        %324 = vmatpush1.msra.mxu0 %v291
        %325 = vmatprep.subr.mxu0 0.0
        %326 = vmatpush1.msra.mxu0 0.0
        %327 = vmatprep.subr.mxu0 0.0
        %328 = vmatpush1.msra.mxu0 0.0
        %329 = vmatprep.subr.mxu0 0.0
        %330 = vmatpush1.msra.mxu0 0.0
        %331 = vmatprep.subr.mxu0 0.0
        %332 = vmatpush1.msra.mxu0 0.0
        %333 = vmatprep.subr.mxu0 0.0
        %334 = vmatpush1.msra.mxu0 0.0
        %335 = vmatprep.subr.mxu0 0.0
        %336 = vmatpush1.msra.mxu0 0.0
        %337 = vmatprep.subr.mxu0 0.0
        %338 = vmatpush1.msra.mxu0 0.0
        %339 = vmatprep.subr.mxu0 0.0
        %340 = vmatpush1.msra.mxu0 0.0
        %341 = vmatprep.subr.mxu0 0.0
        %342 = vmatpush1.msra.mxu0 0.0
        %343 = vmatprep.subr.mxu0 0.0
        %344 = vmatpush1.msra.mxu0 0.0
        %345 = vmatprep.subr.mxu0 0.0
        %346 = vmatpush1.msra.mxu0 0.0
        %347 = vmatprep.subr.mxu0 0.0
        %348 = vmatpush1.msra.mxu0 0.0
        %349 = vmatprep.subr.mxu0 0.0
        %350 = vmatpush1.msra.mxu0 0.0
        %351 = vmatprep.subr.mxu0 0.0
        %352 = vmatpush1.msra.mxu0 0.0
        %353 = vmatprep.subr.mxu0 0.0
        %354 = vmatpush1.msra.mxu0 0.0
        %355 = vmatprep.subr.mxu0 0.0
        %356 = vmatpush1.msra.mxu0 0.0
        %357 = vmatprep.subr.mxu0 0.0
        %358 = vmatpush1.msra.mxu0 0.0
        %359 = vmatprep.subr.mxu0 0.0
        %360 = vmatpush1.msra.mxu0 0.0
        %361 = vmatprep.subr.mxu0 0.0
        %362 = vmatpush1.msra.mxu0 0.0
        %363 = vmatprep.subr.mxu0 0.0
        %364 = vmatpush1.msra.mxu0 0.0
        %365 = vmatprep.subr.mxu0 0.0
        %366 = vmatpush1.msra.mxu0 0.0
        %367 = vmatprep.subr.mxu0 0.0
        %368 = vmatpush1.msra.mxu0 0.0
        %369 = vmatprep.subr.mxu0 0.0
        %370 = vmatpush1.msra.mxu0 0.0
        %371 = vmatprep.subr.mxu0 0.0
        %372 = vmatpush1.msra.mxu0 0.0
        %373 = vmatprep.mubr.f32.mxu0 0.0
        %374 = vmatmul.mubr.f32.gmra.mrb[0].mxu0 %v307
        %v375 = vpop.f32.mrb[0].mxu0
        %v376 = vadd.f32 %v298, %v375
        %v377 = vpop.f32.mrb[0].mxu0
        %v378 = vadd.f32 %v302, %v377
        %379 = vdwg.mxu0
        %v380 = vpack.c.bf16 %v376, %v376
        %vm381 = vcmask 519168
        %382 = vst.msk [vmem:[%s267] sm:$0xf] %vm381, %v380
        %384 = vrot.lane.b32.xlu0 %v376, 64
        %v385 = vpop.permute.xlu0 %384
        %387 = vst.msk [vmem:[%s271] sm:$0xff] %vm305, %v385
        %v388 = vpack.c.bf16 %v378, %v378
        %389 = vst [vmem:[%s275] sm:$0xf] %v388
        %p390 = scmp.lt.s32.totalorder %s21, 1
        %s391 = scalar_select %p390, %s21, 1
        %s392 = smul.addr %s391, 4
        %s393 = scalar_lea.vmem %s3, %s392
        %p394 = scmp.lt.s32.totalorder %s21, 1
        %s395 = scalar_select %p394, %s21, 1
        %s396 = smul.addr %s395, 8
        %s397 = scalar_lea.vmem %s4, %s396
        %p398 = scmp.lt.s32.totalorder %s21, 1
        %s399 = scalar_select %p398, %s21, 1
        %s400 = smul.addr %s399, 4
        %s401 = scalar_lea.vmem %s5, %s400
        // Predicated region
        $region41: #{_forward.2} parent=31 // pred_check
          %p402 = pneg %p107
        $region42: #{_forward.2} parent=31 // pred_check_branch
          %404 = sbr.rel (%p402) target = $region44
        $region43: #{_forward.2} parent=31 // pred_region
          _
        $region44: #{_forward.2} parent=31 // pred_fallthru
          _
        // Predicated region
        $region45: #{_forward.2} parent=31 // pred_check
          %p405 = pneg %p133
        $region46: #{_forward.2} parent=31 // pred_check_branch
          %407 = sbr.rel (%p405) target = $region48
        $region47: #{_forward.2} parent=31 // pred_region
          _
        $region48: #{_forward.2} parent=31 // pred_fallthru
          _
        // Predicated region
        $region49: #{_forward.2} parent=31 // pred_check
          %p408 = pneg %p159
        $region50: #{_forward.2} parent=31 // pred_check_branch
          %410 = sbr.rel (%p408) target = $region52
        $region51: #{_forward.2} parent=31 // pred_region
          _
        $region52: #{_forward.2} parent=31 // pred_fallthru
          _
      $region32: #{_forward.2} parent=5 // pred_fallthru
        _
      %p411 = scmp.le.s32.totalorder 2, %s16
      // Predicated region
      $region53: #{_forward.2} parent=5 // pred_check
        %p412 = pneg %p411
      $region54: #{_forward.2} parent=5 // pred_check_branch
        %414 = sbr.rel (%p412) target = $region56
      $region55: #{_forward.2} parent=5 // pred_region
        %s415 = ssub.s32 %s16, 2
        // Predicated region
        $region57: #{_forward.2} parent=55 // pred_check
          %p416 = pneg %p113
        $region58: #{_forward.2} parent=55 // pred_check_branch
          %418 = sbr.rel (%p416) target = $region60
        $region59: #{_forward.2} parent=55 // pred_region
          %p419 = scmp.lt.s32.totalorder %s22, 1
          %s420 = scalar_select %p419, %s22, 1
          %s421 = smul.addr %s420, 4
          %s422 = scalar_lea.vmem %s3, %s421
        $region60: #{_forward.2} parent=55 // pred_fallthru
          _
        // Predicated region
        $region61: #{_forward.2} parent=55 // pred_check
          %p423 = pneg %p139
        $region62: #{_forward.2} parent=55 // pred_check_branch
          %425 = sbr.rel (%p423) target = $region64
        $region63: #{_forward.2} parent=55 // pred_region
          %p426 = scmp.lt.s32.totalorder %s22, 1
          %s427 = scalar_select %p426, %s22, 1
          %s428 = smul.addr %s427, 8
          %s429 = scalar_lea.vmem %s4, %s428
        $region64: #{_forward.2} parent=55 // pred_fallthru
          _
        // Predicated region
        $region65: #{_forward.2} parent=55 // pred_check
          %p430 = pneg %p165
        $region66: #{_forward.2} parent=55 // pred_check_branch
          %432 = sbr.rel (%p430) target = $region68
        $region67: #{_forward.2} parent=55 // pred_region
          %p433 = scmp.lt.s32.totalorder %s22, 1
          %s434 = scalar_select %p433, %s22, 1
          %s435 = smul.addr %s434, 4
          %s436 = scalar_lea.vmem %s5, %s435
        $region68: #{_forward.2} parent=55 // pred_fallthru
          _
      $region56: #{_forward.2} parent=5 // pred_fallthru
        _
    $region6: #{_forward.2} parent=1 // loop_footer
      %s20 = sadd.s32 1, %s16
    $region7: #{_forward.2} parent=1 // loop_footer_branch
      %15 = sbr.rel target = $region3
    $region8: #{_forward.2} parent=1 // loop_exit
      _
    %437 = vsyncpa [#allocation3], 1
    %s438 = scalar_lea.sflag [#allocation3], 1
    %439 = vsyncpa %s438, 1
    %440 = vsyncpa [#allocation5], 1

// kernel: _forward.3
$region0: #{_forward.3}
  #allocation0 [shape = 'u32[]', space=smem, size = 0x4, offset = 0x4, fixed_abs, tag = 'smem constant byte address 0x4 - core index']
  #allocation1 [shape = 'u32[144,128]{1,0:T(1,128)}', space=vmem, size = 0x12000, scoped, tag = 'internal scratch']
  #allocation2 [shape = 'f32[16,128]{1,0:T(8,128)}', space=vmem, size = 0x2000, scoped, tag = 'scratch operand']
  #allocation3 [shape = 'f32[16,128]{1,0:T(8,128)}', space=vmem, size = 0x2000, scoped, tag = 'scratch operand']
  %s0 = inlined_call_operand.vmem [shape: bf16[16,64], index: 0, kind: input, shape index: {}]
  %s1 = inlined_call_operand.vmem [shape: f32[16,64], index: 1, kind: input, shape index: {}]
  %s2 = inlined_call_operand.vmem [shape: bf16[16,128], index: 2, kind: input, shape index: {}]
  %s3 = inlined_call_operand.vmem [shape: s8[2,16,16], index: 3, kind: input, shape index: {}]
  %s4 = inlined_call_operand.vmem [shape: f32[64,64], index: 4, kind: input, shape index: {}]
  %s5 = inlined_call_operand.vmem [shape: f32[1,64], index: 5, kind: input, shape index: {}]
  %s6 = inlined_call_operand.vmem [shape: f32[1,64], index: 6, kind: input, shape index: {}]
  %s7 = inlined_call_operand.vmem [shape: f32[1,64], index: 7, kind: input, shape index: {}]
  %s8 = inlined_call_operand.hbm [shape: f32[16,128], index: 8, kind: output, shape index: {}]
  %s9 = sld [smem:[#allocation0]]
  $region50: #{_forward.3} parent=0
    _
  %s11 = ssub.s32 1, %s9
  %s12 = scalar_select 0, %s11, %s9
  $region1: #{_forward.3} parent=0
    #allocation4 [shape = 'u8[8192]{0}', space=vmem, size = 0x2000, scoped, tag = 'output window, operand 0, single buffered']
    #allocation5 [shape = 's32[1]{0}', space=sflag, size = 0x4, scoped, tag = 'scoped memory for _forward.3']
    %13 = vsyncpa [#allocation5], 0
    // Predicated region
    $region2: #{_forward.3} parent=1 // pred_check
      _
    $region3: #{_forward.3} parent=1 // pred_check_branch
      %15 = sbr.rel (0) target = $region5
    $region4: #{_forward.3} parent=1 // pred_region
      _
    $region5: #{_forward.3} parent=1 // pred_fallthru
      _
    // Predicated region
    $region6: #{_forward.3} parent=1 // pred_check
      _
    $region7: #{_forward.3} parent=1 // pred_check_branch
      %17 = sbr.rel (0) target = $region9
    $region8: #{_forward.3} parent=1 // pred_region
      _
    $region9: #{_forward.3} parent=1 // pred_fallthru
      _
    // Predicated region
    $region10: #{_forward.3} parent=1 // pred_check
      _
    $region11: #{_forward.3} parent=1 // pred_check_branch
      %19 = sbr.rel (0) target = $region13
    $region12: #{_forward.3} parent=1 // pred_region
      _
    $region13: #{_forward.3} parent=1 // pred_fallthru
      _
    // Predicated region
    $region14: #{_forward.3} parent=1 // pred_check
      _
    $region15: #{_forward.3} parent=1 // pred_check_branch
      %21 = sbr.rel (0) target = $region17
    $region16: #{_forward.3} parent=1 // pred_region
      _
    $region17: #{_forward.3} parent=1 // pred_fallthru
      _
    // Predicated region
    $region18: #{_forward.3} parent=1 // pred_check
      _
    $region19: #{_forward.3} parent=1 // pred_check_branch
      %23 = sbr.rel (0) target = $region21
    $region20: #{_forward.3} parent=1 // pred_region
      _
    $region21: #{_forward.3} parent=1 // pred_fallthru
      _
    // Predicated region
    $region22: #{_forward.3} parent=1 // pred_check
      _
    $region23: #{_forward.3} parent=1 // pred_check_branch
      %25 = sbr.rel (0) target = $region25
    $region24: #{_forward.3} parent=1 // pred_region
      _
    $region25: #{_forward.3} parent=1 // pred_fallthru
      _
    // Predicated region
    $region26: #{_forward.3} parent=1 // pred_check
      _
    $region27: #{_forward.3} parent=1 // pred_check_branch
      %27 = sbr.rel (0) target = $region29
    $region28: #{_forward.3} parent=1 // pred_region
      _
    $region29: #{_forward.3} parent=1 // pred_fallthru
      _
    // Predicated region
    $region30: #{_forward.3} parent=1 // pred_check
      _
    $region31: #{_forward.3} parent=1 // pred_check_branch
      %29 = sbr.rel (0) target = $region33
    $region32: #{_forward.3} parent=1 // pred_region
      _
    $region33: #{_forward.3} parent=1 // pred_fallthru
      _
    %p32 = scmp.eq.s32.totalorder 0, 0
    // Predicated region
    $region34: #{_forward.3} parent=1 // pred_check
      %p33 = pneg %p32
    $region35: #{_forward.3} parent=1 // pred_check_branch
      %35 = sbr.rel (%p33) target = $region37
    $region36: #{_forward.3} parent=1 // pred_region
      %36 = vst [vmem:[#allocation2] sm:$0xff] 0.0
      %37 = vst [vmem:[#allocation2 + $0x8] sm:$0xff] 0.0
      %38 = vst [vmem:[#allocation3] sm:$0xff] 0.0
      %39 = vst [vmem:[#allocation3 + $0x8] sm:$0xff] 0.0
    $region37: #{_forward.3} parent=1 // pred_fallthru
      _
    %v40 = vld [vmem:[%s0] sm:$0xf]
    %v41 = vld [vmem:[%s0 + $0x4] sm:$0xf]
    %v42 = vld [vmem:[%s2] sm:$0xf]
    %v43 = vld [vmem:[%s2 + $0x4] sm:$0xf]
    %v44 = vld [vmem:[%s3] sm:$0x3]
    %v45 = vld [vmem:[%s3 + $0x2] sm:$0x3]
    %v46 = vunpack.c.l.s8.bf16 %v44
    %v47 = vunpack.c.l.s8.bf16 %v45
    %s48 = scalar_lea.vmem %s3, 4
    %v49 = vld [vmem:[%s48] sm:$0x3]
    %v50 = vld [vmem:[%s48 + $0x2] sm:$0x3]
    %v51 = vunpack.c.l.s8.bf16 %v49
    %v52 = vunpack.c.l.s8.bf16 %v50
    %v55 = vunpack.c.l.b16 %v40
    %v56 = vunpack.c.l.b16 %v41
    %v57 = vpack.c.b16 %v56, %v55
    %v60 = vunpack.c.l.b16 %v42
    %v61 = vunpack.c.l.b16 %v43
    %v62 = vpack.c.b16 %v61, %v60
    %vm63 = vcmask 130048
    %v65 = vsel %vm63, %v57, 0
    %v68 = vsel %vm63, %v62, 0
    %70 = vmatprep.subr.bf16.mxu0 0
    %71 = vmatpush1.bf16.xpose.msra.mxu0 %v68
    %72 = vmatprep.subr.bf16.mxu0 0
    %73 = vmatpush1.bf16.xpose.msra.mxu0 0
    %74 = vmatprep.subr.bf16.mxu0 0
    %75 = vmatpush1.bf16.xpose.msra.mxu0 0
    %76 = vmatprep.subr.bf16.mxu0 0
    %77 = vmatpush1.bf16.xpose.msra.mxu0 0
    %78 = vmatprep.subr.bf16.mxu0 0
    %79 = vmatpush1.bf16.xpose.msra.mxu0 0
    %80 = vmatprep.subr.bf16.mxu0 0
    %81 = vmatpush1.bf16.xpose.msra.mxu0 0
    %82 = vmatprep.subr.bf16.mxu0 0
    %83 = vmatpush1.bf16.xpose.msra.mxu0 0
    %84 = vmatprep.subr.bf16.mxu0 0
    %85 = vmatpush1.bf16.xpose.msra.mxu0 0
    %86 = vmatprep.subr.bf16.mxu0 0
    %87 = vmatpush1.bf16.xpose.msra.mxu0 0
    %88 = vmatprep.subr.bf16.mxu0 0
    %89 = vmatpush1.bf16.xpose.msra.mxu0 0
    %90 = vmatprep.subr.bf16.mxu0 0
    %91 = vmatpush1.bf16.xpose.msra.mxu0 0
    %92 = vmatprep.subr.bf16.mxu0 0
    %93 = vmatpush1.bf16.xpose.msra.mxu0 0
    %94 = vmatprep.subr.bf16.mxu0 0
    %95 = vmatpush1.bf16.xpose.msra.mxu0 0
    %96 = vmatprep.subr.bf16.mxu0 0
    %97 = vmatpush1.bf16.xpose.msra.mxu0 0
    %98 = vmatprep.subr.bf16.mxu0 0
    %99 = vmatpush1.bf16.xpose.msra.mxu0 0
    %100 = vmatprep.subr.bf16.mxu0 0
    %101 = vmatpush1.bf16.xpose.msra.mxu0 0
    %102 = vmatprep.mubr.bf16.mxu0 0
    %103 = vmatmul.mubr.bf16.gmra.mrb[0].mxu0 %v65
    %v104 = vpop.f32.mrb[0].mxu0
    %v105 = vadd.f32 0.0, %v104
    %v106 = vpop.f32.mrb[0].mxu0
    %v107 = vpop.f32.mrb[0].mxu0
    %v108 = vadd.f32 0.0, %v107
    %v109 = vpop.f32.mrb[0].mxu0
    %110 = vdwg.mxu0
    %v111 = vmax.f32 %v105, -5.0
    %v112 = vmax.f32 %v108, -5.0
    %v113 = vmin.f32 %v111, 5.0
    %v114 = vmin.f32 %v112, 5.0
    %v115 = vmul.f32 %v113, 1.442695
    %v116 = vpow.pop %v115
    %v117 = vmul.f32 %v114, 1.442695
    %v118 = vpow.pop %v117
    %v119 = vpack.c.bf16 %v118, %v116
    %v122 = vunpack.c.l.b16 %v46
    %v123 = vunpack.c.l.b16 %v47
    %v124 = vpack.c.b16 %v123, %v122
    %v126 = vmul.bf16 %v119, %v124
    %v127 = vld [vmem:[#allocation2] sm:$0xff]
    %v128 = vld [vmem:[#allocation2 + $0x8] sm:$0xff]
    %129 = vrot.lane.b32.xlu0 %v62, 64
    %v130 = vpop.permute.xlu0 %129
    %v133 = vsel %vm63, %v126, 0
    %135 = vmatprep.subr.bf16.mxu0 0
    %136 = vmatpush1.bf16.msra.mxu0 %v130
    %137 = vmatprep.subr.bf16.mxu0 0
    %138 = vmatpush1.bf16.msra.mxu0 0
    %139 = vmatprep.subr.bf16.mxu0 0
    %140 = vmatpush1.bf16.msra.mxu0 0
    %141 = vmatprep.subr.bf16.mxu0 0
    %142 = vmatpush1.bf16.msra.mxu0 0
    %143 = vmatprep.subr.bf16.mxu0 0
    %144 = vmatpush1.bf16.msra.mxu0 0
    %145 = vmatprep.subr.bf16.mxu0 0
    %146 = vmatpush1.bf16.msra.mxu0 0
    %147 = vmatprep.subr.bf16.mxu0 0
    %148 = vmatpush1.bf16.msra.mxu0 0
    %149 = vmatprep.subr.bf16.mxu0 0
    %150 = vmatpush1.bf16.msra.mxu0 0
    %151 = vmatprep.subr.bf16.mxu0 0
    %152 = vmatpush1.bf16.msra.mxu0 0
    %153 = vmatprep.subr.bf16.mxu0 0
    %154 = vmatpush1.bf16.msra.mxu0 0
    %155 = vmatprep.subr.bf16.mxu0 0
    %156 = vmatpush1.bf16.msra.mxu0 0
    %157 = vmatprep.subr.bf16.mxu0 0
    %158 = vmatpush1.bf16.msra.mxu0 0
    %159 = vmatprep.subr.bf16.mxu0 0
    %160 = vmatpush1.bf16.msra.mxu0 0
    %161 = vmatprep.subr.bf16.mxu0 0
    %162 = vmatpush1.bf16.msra.mxu0 0
    %163 = vmatprep.subr.bf16.mxu0 0
    %164 = vmatpush1.bf16.msra.mxu0 0
    %165 = vmatprep.subr.bf16.mxu0 0
    %166 = vmatpush1.bf16.msra.mxu0 0
    %167 = vmatprep.mubr.bf16.mxu0 0
    %168 = vmatmul.mubr.bf16.gmra.mrb[0].mxu0 %v133
    %v169 = vpop.f32.mrb[0].mxu0
    %v170 = vadd.f32 0.0, %v169
    %v171 = vpop.f32.mrb[0].mxu0
    %v172 = vpop.f32.mrb[0].mxu0
    %v173 = vadd.f32 0.0, %v172
    %v174 = vpop.f32.mrb[0].mxu0
    %175 = vdwg.mxu0
    %v176 = vadd.f32 %v127, %v170
    %v177 = vadd.f32 %v128, %v173
    %178 = vst.msk [vmem:[#allocation2] sm:$0xff] %vm63, %v176
    %179 = vst.msk [vmem:[#allocation2 + $0x8] sm:$0xff] %vm63, %v177
    %v180 = vld [vmem:[#allocation3] sm:$0xff]
    %v181 = vld [vmem:[#allocation3 + $0x8] sm:$0xff]
    %182 = vmatprep.subr.bf16.mxu0 0
    %183 = vmatpush1.bf16.msra.mxu0 1065369472
    %184 = vmatprep.subr.bf16.mxu0 0
    %185 = vmatpush1.bf16.msra.mxu0 0
    %186 = vmatprep.subr.bf16.mxu0 0
    %187 = vmatpush1.bf16.msra.mxu0 0
    %188 = vmatprep.subr.bf16.mxu0 0
    %189 = vmatpush1.bf16.msra.mxu0 0
    %190 = vmatprep.subr.bf16.mxu0 0
    %191 = vmatpush1.bf16.msra.mxu0 0
    %192 = vmatprep.subr.bf16.mxu0 0
    %193 = vmatpush1.bf16.msra.mxu0 0
    %194 = vmatprep.subr.bf16.mxu0 0
    %195 = vmatpush1.bf16.msra.mxu0 0
    %196 = vmatprep.subr.bf16.mxu0 0
    %197 = vmatpush1.bf16.msra.mxu0 0
    %198 = vmatprep.subr.bf16.mxu0 0
    %199 = vmatpush1.bf16.msra.mxu0 0
    %200 = vmatprep.subr.bf16.mxu0 0
    %201 = vmatpush1.bf16.msra.mxu0 0
    %202 = vmatprep.subr.bf16.mxu0 0
    %203 = vmatpush1.bf16.msra.mxu0 0
    %204 = vmatprep.subr.bf16.mxu0 0
    %205 = vmatpush1.bf16.msra.mxu0 0
    %206 = vmatprep.subr.bf16.mxu0 0
    %207 = vmatpush1.bf16.msra.mxu0 0
    %208 = vmatprep.subr.bf16.mxu0 0
    %209 = vmatpush1.bf16.msra.mxu0 0
    %210 = vmatprep.subr.bf16.mxu0 0
    %211 = vmatpush1.bf16.msra.mxu0 0
    %212 = vmatprep.subr.bf16.mxu0 0
    %213 = vmatpush1.bf16.msra.mxu0 0
    %214 = vmatprep.mubr.bf16.mxu0 0
    %215 = vmatmul.mubr.bf16.gmra.mrb[0].mxu0 %v133
    %v216 = vpop.f32.mrb[0].mxu0
    %v217 = vadd.f32 0.0, %v216
    %v218 = vpop.f32.mrb[0].mxu0
    %v219 = vpop.f32.mrb[0].mxu0
    %v220 = vadd.f32 0.0, %v219
    %v221 = vpop.f32.mrb[0].mxu0
    %222 = vdwg.mxu0
    %v223 = vadd.f32 %v180, %v217
    %v224 = vadd.f32 %v181, %v220
    %225 = vst.msk [vmem:[#allocation3] sm:$0xff] %vm63, %v223
    %226 = vst.msk [vmem:[#allocation3 + $0x8] sm:$0xff] %vm63, %v224
    %v229 = vunpack.c.l.b16 %v51
    %v230 = vunpack.c.l.b16 %v52
    %v231 = vpack.c.b16 %v230, %v229
    %v233 = vmul.bf16 %v119, %v231
    %v234 = vld [vmem:[#allocation2] sm:$0xff]
    %v235 = vld [vmem:[#allocation2 + $0x8] sm:$0xff]
    %v237 = vsel %vm63, %v233, 0
    %239 = vmatprep.subr.bf16.mxu0 0
    %240 = vmatpush1.bf16.msra.mxu0 %v130
    %241 = vmatprep.subr.bf16.mxu0 0
    %242 = vmatpush1.bf16.msra.mxu0 0
    %243 = vmatprep.subr.bf16.mxu0 0
    %244 = vmatpush1.bf16.msra.mxu0 0
    %245 = vmatprep.subr.bf16.mxu0 0
    %246 = vmatpush1.bf16.msra.mxu0 0
    %247 = vmatprep.subr.bf16.mxu0 0
    %248 = vmatpush1.bf16.msra.mxu0 0
    %249 = vmatprep.subr.bf16.mxu0 0
    %250 = vmatpush1.bf16.msra.mxu0 0
    %251 = vmatprep.subr.bf16.mxu0 0
    %252 = vmatpush1.bf16.msra.mxu0 0
    %253 = vmatprep.subr.bf16.mxu0 0
    %254 = vmatpush1.bf16.msra.mxu0 0
    %255 = vmatprep.subr.bf16.mxu0 0
    %256 = vmatpush1.bf16.msra.mxu0 0
    %257 = vmatprep.subr.bf16.mxu0 0
    %258 = vmatpush1.bf16.msra.mxu0 0
    %259 = vmatprep.subr.bf16.mxu0 0
    %260 = vmatpush1.bf16.msra.mxu0 0
    %261 = vmatprep.subr.bf16.mxu0 0
    %262 = vmatpush1.bf16.msra.mxu0 0
    %263 = vmatprep.subr.bf16.mxu0 0
    %264 = vmatpush1.bf16.msra.mxu0 0
    %265 = vmatprep.subr.bf16.mxu0 0
    %266 = vmatpush1.bf16.msra.mxu0 0
    %267 = vmatprep.subr.bf16.mxu0 0
    %268 = vmatpush1.bf16.msra.mxu0 0
    %269 = vmatprep.subr.bf16.mxu0 0
    %270 = vmatpush1.bf16.msra.mxu0 0
    %271 = vmatprep.mubr.bf16.mxu0 0
    %272 = vmatmul.mubr.bf16.gmra.mrb[0].mxu0 %v237
    %v273 = vpop.f32.mrb[0].mxu0
    %v274 = vadd.f32 0.0, %v273
    %v275 = vpop.f32.mrb[0].mxu0
    %v276 = vpop.f32.mrb[0].mxu0
    %v277 = vadd.f32 0.0, %v276
    %v278 = vpop.f32.mrb[0].mxu0
    %279 = vdwg.mxu0
    %282 = vrot.lane.b32.xlu0 %v274, 64
    %v283 = vpop.permute.xlu0 %282
    %284 = vrot.lane.b32.xlu0 %v277, 64
    %v285 = vpop.permute.xlu0 %284
    %v288 = vadd.f32 %v234, %v283
    %v289 = vadd.f32 %v235, %v285
    %vm290 = vcmask 654848
    %291 = vst.msk [vmem:[#allocation2] sm:$0xff] %vm290, %v288
    %292 = vst.msk [vmem:[#allocation2 + $0x8] sm:$0xff] %vm290, %v289
    %v293 = vld [vmem:[#allocation3] sm:$0xff]
    %v294 = vld [vmem:[#allocation3 + $0x8] sm:$0xff]
    %295 = vmatprep.subr.bf16.mxu0 0
    %296 = vmatpush1.bf16.msra.mxu0 1065369472
    %297 = vmatprep.subr.bf16.mxu0 0
    %298 = vmatpush1.bf16.msra.mxu0 0
    %299 = vmatprep.subr.bf16.mxu0 0
    %300 = vmatpush1.bf16.msra.mxu0 0
    %301 = vmatprep.subr.bf16.mxu0 0
    %302 = vmatpush1.bf16.msra.mxu0 0
    %303 = vmatprep.subr.bf16.mxu0 0
    %304 = vmatpush1.bf16.msra.mxu0 0
    %305 = vmatprep.subr.bf16.mxu0 0
    %306 = vmatpush1.bf16.msra.mxu0 0
    %307 = vmatprep.subr.bf16.mxu0 0
    %308 = vmatpush1.bf16.msra.mxu0 0
    %309 = vmatprep.subr.bf16.mxu0 0
    %310 = vmatpush1.bf16.msra.mxu0 0
    %311 = vmatprep.subr.bf16.mxu0 0
    %312 = vmatpush1.bf16.msra.mxu0 0
    %313 = vmatprep.subr.bf16.mxu0 0
    %314 = vmatpush1.bf16.msra.mxu0 0
    %315 = vmatprep.subr.bf16.mxu0 0
    %316 = vmatpush1.bf16.msra.mxu0 0
    %317 = vmatprep.subr.bf16.mxu0 0
    %318 = vmatpush1.bf16.msra.mxu0 0
    %319 = vmatprep.subr.bf16.mxu0 0
    %320 = vmatpush1.bf16.msra.mxu0 0
    %321 = vmatprep.subr.bf16.mxu0 0
    %322 = vmatpush1.bf16.msra.mxu0 0
    %323 = vmatprep.subr.bf16.mxu0 0
    %324 = vmatpush1.bf16.msra.mxu0 0
    %325 = vmatprep.subr.bf16.mxu0 0
    %326 = vmatpush1.bf16.msra.mxu0 0
    %327 = vmatprep.mubr.bf16.mxu0 0
    %328 = vmatmul.mubr.bf16.gmra.mrb[0].mxu0 %v237
    %v329 = vpop.f32.mrb[0].mxu0
    %v330 = vadd.f32 0.0, %v329
    %v331 = vpop.f32.mrb[0].mxu0
    %v332 = vpop.f32.mrb[0].mxu0
    %v333 = vadd.f32 0.0, %v332
    %v334 = vpop.f32.mrb[0].mxu0
    %335 = vdwg.mxu0
    %338 = vrot.lane.b32.xlu0 %v330, 64
    %v339 = vpop.permute.xlu0 %338
    %340 = vrot.lane.b32.xlu0 %v333, 64
    %v341 = vpop.permute.xlu0 %340
    %v344 = vadd.f32 %v293, %v339
    %v345 = vadd.f32 %v294, %v341
    %346 = vst.msk [vmem:[#allocation3] sm:$0xff] %vm290, %v344
    %347 = vst.msk [vmem:[#allocation3 + $0x8] sm:$0xff] %vm290, %v345
    %348 = vrot.lane.b32.xlu0 %v57, 112
    %v349 = vpop.permute.xlu0 %348
    %350 = vrot.lane.b32.xlu0 %v62, 112
    %v351 = vpop.permute.xlu0 %350
    %v353 = vsel %vm63, %v349, 0
    %v356 = vsel %vm63, %v351, 0
    %358 = vmatprep.subr.bf16.mxu0 0
    %359 = vmatpush1.bf16.xpose.msra.mxu0 %v356
    %360 = vmatprep.subr.bf16.mxu0 0
    %361 = vmatpush1.bf16.xpose.msra.mxu0 0
    %362 = vmatprep.subr.bf16.mxu0 0
    %363 = vmatpush1.bf16.xpose.msra.mxu0 0
    %364 = vmatprep.subr.bf16.mxu0 0
    %365 = vmatpush1.bf16.xpose.msra.mxu0 0
    %366 = vmatprep.subr.bf16.mxu0 0
    %367 = vmatpush1.bf16.xpose.msra.mxu0 0
    %368 = vmatprep.subr.bf16.mxu0 0
    %369 = vmatpush1.bf16.xpose.msra.mxu0 0
    %370 = vmatprep.subr.bf16.mxu0 0
    %371 = vmatpush1.bf16.xpose.msra.mxu0 0
    %372 = vmatprep.subr.bf16.mxu0 0
    %373 = vmatpush1.bf16.xpose.msra.mxu0 0
    %374 = vmatprep.subr.bf16.mxu0 0
    %375 = vmatpush1.bf16.xpose.msra.mxu0 0
    %376 = vmatprep.subr.bf16.mxu0 0
    %377 = vmatpush1.bf16.xpose.msra.mxu0 0
    %378 = vmatprep.subr.bf16.mxu0 0
    %379 = vmatpush1.bf16.xpose.msra.mxu0 0
    %380 = vmatprep.subr.bf16.mxu0 0
    %381 = vmatpush1.bf16.xpose.msra.mxu0 0
    %382 = vmatprep.subr.bf16.mxu0 0
    %383 = vmatpush1.bf16.xpose.msra.mxu0 0
    %384 = vmatprep.subr.bf16.mxu0 0
    %385 = vmatpush1.bf16.xpose.msra.mxu0 0
    %386 = vmatprep.subr.bf16.mxu0 0
    %387 = vmatpush1.bf16.xpose.msra.mxu0 0
    %388 = vmatprep.subr.bf16.mxu0 0
    %389 = vmatpush1.bf16.xpose.msra.mxu0 0
    %390 = vmatprep.mubr.bf16.mxu0 0
    %391 = vmatmul.mubr.bf16.gmra.mrb[0].mxu0 %v353
    %v392 = vpop.f32.mrb[0].mxu0
    %v393 = vadd.f32 0.0, %v392
    %v394 = vpop.f32.mrb[0].mxu0
    %v395 = vpop.f32.mrb[0].mxu0
    %v396 = vadd.f32 0.0, %v395
    %v397 = vpop.f32.mrb[0].mxu0
    %398 = vdwg.mxu0
    %v399 = vmax.f32 %v393, -5.0
    %v400 = vmax.f32 %v396, -5.0
    %v401 = vmin.f32 %v399, 5.0
    %v402 = vmin.f32 %v400, 5.0
    %v403 = vmul.f32 %v401, 1.442695
    %v404 = vpow.pop %v403
    %v405 = vmul.f32 %v402, 1.442695
    %v406 = vpow.pop %v405
    %v407 = vpack.c.bf16 %v406, %v404
    %v408 = vmul.bf16 %v407, %v124
    %v409 = vld [vmem:[#allocation2] sm:$0xff]
    %v410 = vld [vmem:[#allocation2 + $0x8] sm:$0xff]
    %411 = vrot.lane.b32.xlu0 %v62, 48
    %v412 = vpop.permute.xlu0 %411
    %v415 = vsel %vm63, %v408, 0
    %417 = vmatprep.subr.bf16.mxu0 0
    %418 = vmatpush1.bf16.msra.mxu0 %v412
    %419 = vmatprep.subr.bf16.mxu0 0
    %420 = vmatpush1.bf16.msra.mxu0 0
    %421 = vmatprep.subr.bf16.mxu0 0
    %422 = vmatpush1.bf16.msra.mxu0 0
    %423 = vmatprep.subr.bf16.mxu0 0
    %424 = vmatpush1.bf16.msra.mxu0 0
    %425 = vmatprep.subr.bf16.mxu0 0
    %426 = vmatpush1.bf16.msra.mxu0 0
    %427 = vmatprep.subr.bf16.mxu0 0
    %428 = vmatpush1.bf16.msra.mxu0 0
    %429 = vmatprep.subr.bf16.mxu0 0
    %430 = vmatpush1.bf16.msra.mxu0 0
    %431 = vmatprep.subr.bf16.mxu0 0
    %432 = vmatpush1.bf16.msra.mxu0 0
    %433 = vmatprep.subr.bf16.mxu0 0
    %434 = vmatpush1.bf16.msra.mxu0 0
    %435 = vmatprep.subr.bf16.mxu0 0
    %436 = vmatpush1.bf16.msra.mxu0 0
    %437 = vmatprep.subr.bf16.mxu0 0
    %438 = vmatpush1.bf16.msra.mxu0 0
    %439 = vmatprep.subr.bf16.mxu0 0
    %440 = vmatpush1.bf16.msra.mxu0 0
    %441 = vmatprep.subr.bf16.mxu0 0
    %442 = vmatpush1.bf16.msra.mxu0 0
    %443 = vmatprep.subr.bf16.mxu0 0
    %444 = vmatpush1.bf16.msra.mxu0 0
    %445 = vmatprep.subr.bf16.mxu0 0
    %446 = vmatpush1.bf16.msra.mxu0 0
    %447 = vmatprep.subr.bf16.mxu0 0
    %448 = vmatpush1.bf16.msra.mxu0 0
    %449 = vmatprep.mubr.bf16.mxu0 0
    %450 = vmatmul.mubr.bf16.gmra.mrb[0].mxu0 %v415
    %v451 = vpop.f32.mrb[0].mxu0
    %v452 = vadd.f32 0.0, %v451
    %v453 = vpop.f32.mrb[0].mxu0
    %v454 = vpop.f32.mrb[0].mxu0
    %v455 = vadd.f32 0.0, %v454
    %v456 = vpop.f32.mrb[0].mxu0
    %457 = vdwg.mxu0
    %460 = vrot.lane.b32.xlu0 %v452, 16
    %v461 = vpop.permute.xlu0 %460
    %462 = vrot.lane.b32.xlu0 %v455, 16
    %v463 = vpop.permute.xlu0 %462
    %v466 = vadd.f32 %v409, %v461
    %v467 = vadd.f32 %v410, %v463
    %vm468 = vcmask 261248
    %469 = vst.msk [vmem:[#allocation2] sm:$0xff] %vm468, %v466
    %470 = vst.msk [vmem:[#allocation2 + $0x8] sm:$0xff] %vm468, %v467
    %v471 = vld [vmem:[#allocation3] sm:$0xff]
    %v472 = vld [vmem:[#allocation3 + $0x8] sm:$0xff]
    %473 = vmatprep.subr.bf16.mxu0 0
    %474 = vmatpush1.bf16.msra.mxu0 1065369472
    %475 = vmatprep.subr.bf16.mxu0 0
    %476 = vmatpush1.bf16.msra.mxu0 0
    %477 = vmatprep.subr.bf16.mxu0 0
    %478 = vmatpush1.bf16.msra.mxu0 0
    %479 = vmatprep.subr.bf16.mxu0 0
    %480 = vmatpush1.bf16.msra.mxu0 0
    %481 = vmatprep.subr.bf16.mxu0 0
    %482 = vmatpush1.bf16.msra.mxu0 0
    %483 = vmatprep.subr.bf16.mxu0 0
    %484 = vmatpush1.bf16.msra.mxu0 0
    %485 = vmatprep.subr.bf16.mxu0 0
    %486 = vmatpush1.bf16.msra.mxu0 0
    %487 = vmatprep.subr.bf16.mxu0 0
    %488 = vmatpush1.bf16.msra.mxu0 0
    %489 = vmatprep.subr.bf16.mxu0 0
    %490 = vmatpush1.bf16.msra.mxu0 0
    %491 = vmatprep.subr.bf16.mxu0 0
    %492 = vmatpush1.bf16.msra.mxu0 0
    %493 = vmatprep.subr.bf16.mxu0 0
    %494 = vmatpush1.bf16.msra.mxu0 0
    %495 = vmatprep.subr.bf16.mxu0 0
    %496 = vmatpush1.bf16.msra.mxu0 0
    %497 = vmatprep.subr.bf16.mxu0 0
    %498 = vmatpush1.bf16.msra.mxu0 0
    %499 = vmatprep.subr.bf16.mxu0 0
    %500 = vmatpush1.bf16.msra.mxu0 0
    %501 = vmatprep.subr.bf16.mxu0 0
    %502 = vmatpush1.bf16.msra.mxu0 0
    %503 = vmatprep.subr.bf16.mxu0 0
    %504 = vmatpush1.bf16.msra.mxu0 0
    %505 = vmatprep.mubr.bf16.mxu0 0
    %506 = vmatmul.mubr.bf16.gmra.mrb[0].mxu0 %v415
    %v507 = vpop.f32.mrb[0].mxu0
    %v508 = vadd.f32 0.0, %v507
    %v509 = vpop.f32.mrb[0].mxu0
    %v510 = vpop.f32.mrb[0].mxu0
    %v511 = vadd.f32 0.0, %v510
    %v512 = vpop.f32.mrb[0].mxu0
    %513 = vdwg.mxu0
    %516 = vrot.lane.b32.xlu0 %v508, 16
    %v517 = vpop.permute.xlu0 %516
    %518 = vrot.lane.b32.xlu0 %v511, 16
    %v519 = vpop.permute.xlu0 %518
    %v522 = vadd.f32 %v471, %v517
    %v523 = vadd.f32 %v472, %v519
    %524 = vst.msk [vmem:[#allocation3] sm:$0xff] %vm468, %v522
    %525 = vst.msk [vmem:[#allocation3 + $0x8] sm:$0xff] %vm468, %v523
    %v526 = vmul.bf16 %v407, %v231
    %v527 = vld [vmem:[#allocation2] sm:$0xff]
    %v528 = vld [vmem:[#allocation2 + $0x8] sm:$0xff]
    %v530 = vsel %vm63, %v526, 0
    %532 = vmatprep.subr.bf16.mxu0 0
    %533 = vmatpush1.bf16.msra.mxu0 %v412
    %534 = vmatprep.subr.bf16.mxu0 0
    %535 = vmatpush1.bf16.msra.mxu0 0
    %536 = vmatprep.subr.bf16.mxu0 0
    %537 = vmatpush1.bf16.msra.mxu0 0
    %538 = vmatprep.subr.bf16.mxu0 0
    %539 = vmatpush1.bf16.msra.mxu0 0
    %540 = vmatprep.subr.bf16.mxu0 0
    %541 = vmatpush1.bf16.msra.mxu0 0
    %542 = vmatprep.subr.bf16.mxu0 0
    %543 = vmatpush1.bf16.msra.mxu0 0
    %544 = vmatprep.subr.bf16.mxu0 0
    %545 = vmatpush1.bf16.msra.mxu0 0
    %546 = vmatprep.subr.bf16.mxu0 0
    %547 = vmatpush1.bf16.msra.mxu0 0
    %548 = vmatprep.subr.bf16.mxu0 0
    %549 = vmatpush1.bf16.msra.mxu0 0
    %550 = vmatprep.subr.bf16.mxu0 0
    %551 = vmatpush1.bf16.msra.mxu0 0
    %552 = vmatprep.subr.bf16.mxu0 0
    %553 = vmatpush1.bf16.msra.mxu0 0
    %554 = vmatprep.subr.bf16.mxu0 0
    %555 = vmatpush1.bf16.msra.mxu0 0
    %556 = vmatprep.subr.bf16.mxu0 0
    %557 = vmatpush1.bf16.msra.mxu0 0
    %558 = vmatprep.subr.bf16.mxu0 0
    %559 = vmatpush1.bf16.msra.mxu0 0
    %560 = vmatprep.subr.bf16.mxu0 0
    %561 = vmatpush1.bf16.msra.mxu0 0
    %562 = vmatprep.subr.bf16.mxu0 0
    %563 = vmatpush1.bf16.msra.mxu0 0
    %564 = vmatprep.mubr.bf16.mxu0 0
    %565 = vmatmul.mubr.bf16.gmra.mrb[0].mxu0 %v530
    %v566 = vpop.f32.mrb[0].mxu0
    %v567 = vadd.f32 0.0, %v566
    %v568 = vpop.f32.mrb[0].mxu0
    %v569 = vpop.f32.mrb[0].mxu0
    %v570 = vadd.f32 0.0, %v569
    %v571 = vpop.f32.mrb[0].mxu0
    %572 = vdwg.mxu0
    %575 = vrot.lane.b32.xlu0 %v567, 80
    %v576 = vpop.permute.xlu0 %575
    %577 = vrot.lane.b32.xlu0 %v570, 80
    %v578 = vpop.permute.xlu0 %577
    %v581 = vadd.f32 %v527, %v576
    %v582 = vadd.f32 %v528, %v578
    %vm583 = vcmask 786048
    %584 = vst.msk [vmem:[#allocation2] sm:$0xff] %vm583, %v581
    %585 = vst.msk [vmem:[#allocation2 + $0x8] sm:$0xff] %vm583, %v582
    %v586 = vld [vmem:[#allocation3] sm:$0xff]
    %v587 = vld [vmem:[#allocation3 + $0x8] sm:$0xff]
    %588 = vmatprep.subr.bf16.mxu0 0
    %589 = vmatpush1.bf16.msra.mxu0 1065369472
    %590 = vmatprep.subr.bf16.mxu0 0
    %591 = vmatpush1.bf16.msra.mxu0 0
    %592 = vmatprep.subr.bf16.mxu0 0
    %593 = vmatpush1.bf16.msra.mxu0 0
    %594 = vmatprep.subr.bf16.mxu0 0
    %595 = vmatpush1.bf16.msra.mxu0 0
    %596 = vmatprep.subr.bf16.mxu0 0
    %597 = vmatpush1.bf16.msra.mxu0 0
    %598 = vmatprep.subr.bf16.mxu0 0
    %599 = vmatpush1.bf16.msra.mxu0 0
    %600 = vmatprep.subr.bf16.mxu0 0
    %601 = vmatpush1.bf16.msra.mxu0 0
    %602 = vmatprep.subr.bf16.mxu0 0
    %603 = vmatpush1.bf16.msra.mxu0 0
    %604 = vmatprep.subr.bf16.mxu0 0
    %605 = vmatpush1.bf16.msra.mxu0 0
    %606 = vmatprep.subr.bf16.mxu0 0
    %607 = vmatpush1.bf16.msra.mxu0 0
    %608 = vmatprep.subr.bf16.mxu0 0
    %609 = vmatpush1.bf16.msra.mxu0 0
    %610 = vmatprep.subr.bf16.mxu0 0
    %611 = vmatpush1.bf16.msra.mxu0 0
    %612 = vmatprep.subr.bf16.mxu0 0
    %613 = vmatpush1.bf16.msra.mxu0 0
    %614 = vmatprep.subr.bf16.mxu0 0
    %615 = vmatpush1.bf16.msra.mxu0 0
    %616 = vmatprep.subr.bf16.mxu0 0
    %617 = vmatpush1.bf16.msra.mxu0 0
    %618 = vmatprep.subr.bf16.mxu0 0
    %619 = vmatpush1.bf16.msra.mxu0 0
    %620 = vmatprep.mubr.bf16.mxu0 0
    %621 = vmatmul.mubr.bf16.gmra.mrb[0].mxu0 %v530
    %v622 = vpop.f32.mrb[0].mxu0
    %v623 = vadd.f32 0.0, %v622
    %v624 = vpop.f32.mrb[0].mxu0
    %v625 = vpop.f32.mrb[0].mxu0
    %v626 = vadd.f32 0.0, %v625
    %v627 = vpop.f32.mrb[0].mxu0
    %628 = vdwg.mxu0
    %631 = vrot.lane.b32.xlu0 %v623, 80
    %v632 = vpop.permute.xlu0 %631
    %633 = vrot.lane.b32.xlu0 %v626, 80
    %v634 = vpop.permute.xlu0 %633
    %v637 = vadd.f32 %v586, %v632
    %v638 = vadd.f32 %v587, %v634
    %639 = vst.msk [vmem:[#allocation3] sm:$0xff] %vm583, %v637
    %640 = vst.msk [vmem:[#allocation3 + $0x8] sm:$0xff] %vm583, %v638
    %641 = vrot.lane.b32.xlu0 %v57, 96
    %v642 = vpop.permute.xlu0 %641
    %643 = vrot.lane.b32.xlu0 %v62, 96
    %v644 = vpop.permute.xlu0 %643
    %v646 = vsel %vm63, %v642, 0
    %v649 = vsel %vm63, %v644, 0
    %651 = vmatprep.subr.bf16.mxu0 0
    %652 = vmatpush1.bf16.xpose.msra.mxu0 %v649
    %653 = vmatprep.subr.bf16.mxu0 0
    %654 = vmatpush1.bf16.xpose.msra.mxu0 0
    %655 = vmatprep.subr.bf16.mxu0 0
    %656 = vmatpush1.bf16.xpose.msra.mxu0 0
    %657 = vmatprep.subr.bf16.mxu0 0
    %658 = vmatpush1.bf16.xpose.msra.mxu0 0
    %659 = vmatprep.subr.bf16.mxu0 0
    %660 = vmatpush1.bf16.xpose.msra.mxu0 0
    %661 = vmatprep.subr.bf16.mxu0 0
    %662 = vmatpush1.bf16.xpose.msra.mxu0 0
    %663 = vmatprep.subr.bf16.mxu0 0
    %664 = vmatpush1.bf16.xpose.msra.mxu0 0
    %665 = vmatprep.subr.bf16.mxu0 0
    %666 = vmatpush1.bf16.xpose.msra.mxu0 0
    %667 = vmatprep.subr.bf16.mxu0 0
    %668 = vmatpush1.bf16.xpose.msra.mxu0 0
    %669 = vmatprep.subr.bf16.mxu0 0
    %670 = vmatpush1.bf16.xpose.msra.mxu0 0
    %671 = vmatprep.subr.bf16.mxu0 0
    %672 = vmatpush1.bf16.xpose.msra.mxu0 0
    %673 = vmatprep.subr.bf16.mxu0 0
    %674 = vmatpush1.bf16.xpose.msra.mxu0 0
    %675 = vmatprep.subr.bf16.mxu0 0
    %676 = vmatpush1.bf16.xpose.msra.mxu0 0
    %677 = vmatprep.subr.bf16.mxu0 0
    %678 = vmatpush1.bf16.xpose.msra.mxu0 0
    %679 = vmatprep.subr.bf16.mxu0 0
    %680 = vmatpush1.bf16.xpose.msra.mxu0 0
    %681 = vmatprep.subr.bf16.mxu0 0
    %682 = vmatpush1.bf16.xpose.msra.mxu0 0
    %683 = vmatprep.mubr.bf16.mxu0 0
    %684 = vmatmul.mubr.bf16.gmra.mrb[0].mxu0 %v646
    %v685 = vpop.f32.mrb[0].mxu0
    %v686 = vadd.f32 0.0, %v685
    %v687 = vpop.f32.mrb[0].mxu0
    %v688 = vpop.f32.mrb[0].mxu0
    %v689 = vadd.f32 0.0, %v688
    %v690 = vpop.f32.mrb[0].mxu0
    %691 = vdwg.mxu0
    %v692 = vmax.f32 %v686, -5.0
    %v693 = vmax.f32 %v689, -5.0
    %v694 = vmin.f32 %v692, 5.0
    %v695 = vmin.f32 %v693, 5.0
    %v696 = vmul.f32 %v694, 1.442695
    %v697 = vpow.pop %v696
    %v698 = vmul.f32 %v695, 1.442695
    %v699 = vpow.pop %v698
    %v700 = vpack.c.bf16 %v699, %v697
    %v701 = vmul.bf16 %v700, %v124
    %v702 = vld [vmem:[#allocation2] sm:$0xff]
    %v703 = vld [vmem:[#allocation2 + $0x8] sm:$0xff]
    %704 = vrot.lane.b32.xlu0 %v62, 32
    %v705 = vpop.permute.xlu0 %704
    %v708 = vsel %vm63, %v701, 0
    %710 = vmatprep.subr.bf16.mxu0 0
    %711 = vmatpush1.bf16.msra.mxu0 %v705
    %712 = vmatprep.subr.bf16.mxu0 0
    %713 = vmatpush1.bf16.msra.mxu0 0
    %714 = vmatprep.subr.bf16.mxu0 0
    %715 = vmatpush1.bf16.msra.mxu0 0
    %716 = vmatprep.subr.bf16.mxu0 0
    %717 = vmatpush1.bf16.msra.mxu0 0
    %718 = vmatprep.subr.bf16.mxu0 0
    %719 = vmatpush1.bf16.msra.mxu0 0
    %720 = vmatprep.subr.bf16.mxu0 0
    %721 = vmatpush1.bf16.msra.mxu0 0
    %722 = vmatprep.subr.bf16.mxu0 0
    %723 = vmatpush1.bf16.msra.mxu0 0
    %724 = vmatprep.subr.bf16.mxu0 0
    %725 = vmatpush1.bf16.msra.mxu0 0
    %726 = vmatprep.subr.bf16.mxu0 0
    %727 = vmatpush1.bf16.msra.mxu0 0
    %728 = vmatprep.subr.bf16.mxu0 0
    %729 = vmatpush1.bf16.msra.mxu0 0
    %730 = vmatprep.subr.bf16.mxu0 0
    %731 = vmatpush1.bf16.msra.mxu0 0
    %732 = vmatprep.subr.bf16.mxu0 0
    %733 = vmatpush1.bf16.msra.mxu0 0
    %734 = vmatprep.subr.bf16.mxu0 0
    %735 = vmatpush1.bf16.msra.mxu0 0
    %736 = vmatprep.subr.bf16.mxu0 0
    %737 = vmatpush1.bf16.msra.mxu0 0
    %738 = vmatprep.subr.bf16.mxu0 0
    %739 = vmatpush1.bf16.msra.mxu0 0
    %740 = vmatprep.subr.bf16.mxu0 0
    %741 = vmatpush1.bf16.msra.mxu0 0
    %742 = vmatprep.mubr.bf16.mxu0 0
    %743 = vmatmul.mubr.bf16.gmra.mrb[0].mxu0 %v708
    %v744 = vpop.f32.mrb[0].mxu0
    %v745 = vadd.f32 0.0, %v744
    %v746 = vpop.f32.mrb[0].mxu0
    %v747 = vpop.f32.mrb[0].mxu0
    %v748 = vadd.f32 0.0, %v747
    %v749 = vpop.f32.mrb[0].mxu0
    %750 = vdwg.mxu0
    %753 = vrot.lane.b32.xlu0 %v745, 32
    %v754 = vpop.permute.xlu0 %753
    %755 = vrot.lane.b32.xlu0 %v748, 32
    %v756 = vpop.permute.xlu0 %755
    %v759 = vadd.f32 %v702, %v754
    %v760 = vadd.f32 %v703, %v756
    %vm761 = vcmask 392448
    %762 = vst.msk [vmem:[#allocation2] sm:$0xff] %vm761, %v759
    %763 = vst.msk [vmem:[#allocation2 + $0x8] sm:$0xff] %vm761, %v760
    %v764 = vld [vmem:[#allocation3] sm:$0xff]
    %v765 = vld [vmem:[#allocation3 + $0x8] sm:$0xff]
    %766 = vmatprep.subr.bf16.mxu0 0
    %767 = vmatpush1.bf16.msra.mxu0 1065369472
    %768 = vmatprep.subr.bf16.mxu0 0
    %769 = vmatpush1.bf16.msra.mxu0 0
    %770 = vmatprep.subr.bf16.mxu0 0
    %771 = vmatpush1.bf16.msra.mxu0 0
    %772 = vmatprep.subr.bf16.mxu0 0
    %773 = vmatpush1.bf16.msra.mxu0 0
    %774 = vmatprep.subr.bf16.mxu0 0
    %775 = vmatpush1.bf16.msra.mxu0 0
    %776 = vmatprep.subr.bf16.mxu0 0
    %777 = vmatpush1.bf16.msra.mxu0 0
    %778 = vmatprep.subr.bf16.mxu0 0
    %779 = vmatpush1.bf16.msra.mxu0 0
    %780 = vmatprep.subr.bf16.mxu0 0
    %781 = vmatpush1.bf16.msra.mxu0 0
    %782 = vmatprep.subr.bf16.mxu0 0
    %783 = vmatpush1.bf16.msra.mxu0 0
    %784 = vmatprep.subr.bf16.mxu0 0
    %785 = vmatpush1.bf16.msra.mxu0 0
    %786 = vmatprep.subr.bf16.mxu0 0
    %787 = vmatpush1.bf16.msra.mxu0 0
    %788 = vmatprep.subr.bf16.mxu0 0
    %789 = vmatpush1.bf16.msra.mxu0 0
    %790 = vmatprep.subr.bf16.mxu0 0
    %791 = vmatpush1.bf16.msra.mxu0 0
    %792 = vmatprep.subr.bf16.mxu0 0
    %793 = vmatpush1.bf16.msra.mxu0 0
    %794 = vmatprep.subr.bf16.mxu0 0
    %795 = vmatpush1.bf16.msra.mxu0 0
    %796 = vmatprep.subr.bf16.mxu0 0
    %797 = vmatpush1.bf16.msra.mxu0 0
    %798 = vmatprep.mubr.bf16.mxu0 0
    %799 = vmatmul.mubr.bf16.gmra.mrb[0].mxu0 %v708
    %v800 = vpop.f32.mrb[0].mxu0
    %v801 = vadd.f32 0.0, %v800
    %v802 = vpop.f32.mrb[0].mxu0
    %v803 = vpop.f32.mrb[0].mxu0
    %v804 = vadd.f32 0.0, %v803
    %v805 = vpop.f32.mrb[0].mxu0
    %806 = vdwg.mxu0
    %809 = vrot.lane.b32.xlu0 %v801, 32
    %v810 = vpop.permute.xlu0 %809
    %811 = vrot.lane.b32.xlu0 %v804, 32
    %v812 = vpop.permute.xlu0 %811
    %v815 = vadd.f32 %v764, %v810
    %v816 = vadd.f32 %v765, %v812
    %817 = vst.msk [vmem:[#allocation3] sm:$0xff] %vm761, %v815
    %818 = vst.msk [vmem:[#allocation3 + $0x8] sm:$0xff] %vm761, %v816
    %v819 = vmul.bf16 %v700, %v231
    %v820 = vld [vmem:[#allocation2] sm:$0xff]
    %v821 = vld [vmem:[#allocation2 + $0x8] sm:$0xff]
    %v823 = vsel %vm63, %v819, 0
    %825 = vmatprep.subr.bf16.mxu0 0
    %826 = vmatpush1.bf16.msra.mxu0 %v705
    %827 = vmatprep.subr.bf16.mxu0 0
    %828 = vmatpush1.bf16.msra.mxu0 0
    %829 = vmatprep.subr.bf16.mxu0 0
    %830 = vmatpush1.bf16.msra.mxu0 0
    %831 = vmatprep.subr.bf16.mxu0 0
    %832 = vmatpush1.bf16.msra.mxu0 0
    %833 = vmatprep.subr.bf16.mxu0 0
    %834 = vmatpush1.bf16.msra.mxu0 0
    %835 = vmatprep.subr.bf16.mxu0 0
    %836 = vmatpush1.bf16.msra.mxu0 0
    %837 = vmatprep.subr.bf16.mxu0 0
    %838 = vmatpush1.bf16.msra.mxu0 0
    %839 = vmatprep.subr.bf16.mxu0 0
    %840 = vmatpush1.bf16.msra.mxu0 0
    %841 = vmatprep.subr.bf16.mxu0 0
    %842 = vmatpush1.bf16.msra.mxu0 0
    %843 = vmatprep.subr.bf16.mxu0 0
    %844 = vmatpush1.bf16.msra.mxu0 0
    %845 = vmatprep.subr.bf16.mxu0 0
    %846 = vmatpush1.bf16.msra.mxu0 0
    %847 = vmatprep.subr.bf16.mxu0 0
    %848 = vmatpush1.bf16.msra.mxu0 0
    %849 = vmatprep.subr.bf16.mxu0 0
    %850 = vmatpush1.bf16.msra.mxu0 0
    %851 = vmatprep.subr.bf16.mxu0 0
    %852 = vmatpush1.bf16.msra.mxu0 0
    %853 = vmatprep.subr.bf16.mxu0 0
    %854 = vmatpush1.bf16.msra.mxu0 0
    %855 = vmatprep.subr.bf16.mxu0 0
    %856 = vmatpush1.bf16.msra.mxu0 0
    %857 = vmatprep.mubr.bf16.mxu0 0
    %858 = vmatmul.mubr.bf16.gmra.mrb[0].mxu0 %v823
    %v859 = vpop.f32.mrb[0].mxu0
    %v860 = vadd.f32 0.0, %v859
    %v861 = vpop.f32.mrb[0].mxu0
    %v862 = vpop.f32.mrb[0].mxu0
    %v863 = vadd.f32 0.0, %v862
    %v864 = vpop.f32.mrb[0].mxu0
    %865 = vdwg.mxu0
    %868 = vrot.lane.b32.xlu0 %v860, 96
    %v869 = vpop.permute.xlu0 %868
    %870 = vrot.lane.b32.xlu0 %v863, 96
    %v871 = vpop.permute.xlu0 %870
    %v874 = vadd.f32 %v820, %v869
    %v875 = vadd.f32 %v821, %v871
    %vm876 = vcmask 917248
    %877 = vst.msk [vmem:[#allocation2] sm:$0xff] %vm876, %v874
    %878 = vst.msk [vmem:[#allocation2 + $0x8] sm:$0xff] %vm876, %v875
    %v879 = vld [vmem:[#allocation3] sm:$0xff]
    %v880 = vld [vmem:[#allocation3 + $0x8] sm:$0xff]
    %881 = vmatprep.subr.bf16.mxu0 0
    %882 = vmatpush1.bf16.msra.mxu0 1065369472
    %883 = vmatprep.subr.bf16.mxu0 0
    %884 = vmatpush1.bf16.msra.mxu0 0
    %885 = vmatprep.subr.bf16.mxu0 0
    %886 = vmatpush1.bf16.msra.mxu0 0
    %887 = vmatprep.subr.bf16.mxu0 0
    %888 = vmatpush1.bf16.msra.mxu0 0
    %889 = vmatprep.subr.bf16.mxu0 0
    %890 = vmatpush1.bf16.msra.mxu0 0
    %891 = vmatprep.subr.bf16.mxu0 0
    %892 = vmatpush1.bf16.msra.mxu0 0
    %893 = vmatprep.subr.bf16.mxu0 0
    %894 = vmatpush1.bf16.msra.mxu0 0
    %895 = vmatprep.subr.bf16.mxu0 0
    %896 = vmatpush1.bf16.msra.mxu0 0
    %897 = vmatprep.subr.bf16.mxu0 0
    %898 = vmatpush1.bf16.msra.mxu0 0
    %899 = vmatprep.subr.bf16.mxu0 0
    %900 = vmatpush1.bf16.msra.mxu0 0
    %901 = vmatprep.subr.bf16.mxu0 0
    %902 = vmatpush1.bf16.msra.mxu0 0
    %903 = vmatprep.subr.bf16.mxu0 0
    %904 = vmatpush1.bf16.msra.mxu0 0
    %905 = vmatprep.subr.bf16.mxu0 0
    %906 = vmatpush1.bf16.msra.mxu0 0
    %907 = vmatprep.subr.bf16.mxu0 0
    %908 = vmatpush1.bf16.msra.mxu0 0
    %909 = vmatprep.subr.bf16.mxu0 0
    %910 = vmatpush1.bf16.msra.mxu0 0
    %911 = vmatprep.subr.bf16.mxu0 0
    %912 = vmatpush1.bf16.msra.mxu0 0
    %913 = vmatprep.mubr.bf16.mxu0 0
    %914 = vmatmul.mubr.bf16.gmra.mrb[0].mxu0 %v823
    %v915 = vpop.f32.mrb[0].mxu0
    %v916 = vadd.f32 0.0, %v915
    %v917 = vpop.f32.mrb[0].mxu0
    %v918 = vpop.f32.mrb[0].mxu0
    %v919 = vadd.f32 0.0, %v918
    %v920 = vpop.f32.mrb[0].mxu0
    %921 = vdwg.mxu0
    %924 = vrot.lane.b32.xlu0 %v916, 96
    %v925 = vpop.permute.xlu0 %924
    %926 = vrot.lane.b32.xlu0 %v919, 96
    %v927 = vpop.permute.xlu0 %926
    %v930 = vadd.f32 %v879, %v925
    %v931 = vadd.f32 %v880, %v927
    %932 = vst.msk [vmem:[#allocation3] sm:$0xff] %vm876, %v930
    %933 = vst.msk [vmem:[#allocation3 + $0x8] sm:$0xff] %vm876, %v931
    %934 = vrot.lane.b32.xlu0 %v57, 80
    %v935 = vpop.permute.xlu0 %934
    %936 = vrot.lane.b32.xlu0 %v62, 80
    %v937 = vpop.permute.xlu0 %936
    %v939 = vsel %vm63, %v935, 0
    %v942 = vsel %vm63, %v937, 0
    %944 = vmatprep.subr.bf16.mxu0 0
    %945 = vmatpush1.bf16.xpose.msra.mxu0 %v942
    %946 = vmatprep.subr.bf16.mxu0 0
    %947 = vmatpush1.bf16.xpose.msra.mxu0 0
    %948 = vmatprep.subr.bf16.mxu0 0
    %949 = vmatpush1.bf16.xpose.msra.mxu0 0
    %950 = vmatprep.subr.bf16.mxu0 0
    %951 = vmatpush1.bf16.xpose.msra.mxu0 0
    %952 = vmatprep.subr.bf16.mxu0 0
    %953 = vmatpush1.bf16.xpose.msra.mxu0 0
    %954 = vmatprep.subr.bf16.mxu0 0
    %955 = vmatpush1.bf16.xpose.msra.mxu0 0
    %956 = vmatprep.subr.bf16.mxu0 0
    %957 = vmatpush1.bf16.xpose.msra.mxu0 0
    %958 = vmatprep.subr.bf16.mxu0 0
    %959 = vmatpush1.bf16.xpose.msra.mxu0 0
    %960 = vmatprep.subr.bf16.mxu0 0
    %961 = vmatpush1.bf16.xpose.msra.mxu0 0
    %962 = vmatprep.subr.bf16.mxu0 0
    %963 = vmatpush1.bf16.xpose.msra.mxu0 0
    %964 = vmatprep.subr.bf16.mxu0 0
    %965 = vmatpush1.bf16.xpose.msra.mxu0 0
    %966 = vmatprep.subr.bf16.mxu0 0
    %967 = vmatpush1.bf16.xpose.msra.mxu0 0
    %968 = vmatprep.subr.bf16.mxu0 0
    %969 = vmatpush1.bf16.xpose.msra.mxu0 0
    %970 = vmatprep.subr.bf16.mxu0 0
    %971 = vmatpush1.bf16.xpose.msra.mxu0 0
    %972 = vmatprep.subr.bf16.mxu0 0
    %973 = vmatpush1.bf16.xpose.msra.mxu0 0
    %974 = vmatprep.subr.bf16.mxu0 0
    %975 = vmatpush1.bf16.xpose.msra.mxu0 0
    %976 = vmatprep.mubr.bf16.mxu0 0
    %977 = vmatmul.mubr.bf16.gmra.mrb[0].mxu0 %v939
    %v978 = vpop.f32.mrb[0].mxu0
    %v979 = vadd.f32 0.0, %v978
    %v980 = vpop.f32.mrb[0].mxu0
    %v981 = vpop.f32.mrb[0].mxu0
    %v982 = vadd.f32 0.0, %v981
    %v983 = vpop.f32.mrb[0].mxu0
    %984 = vdwg.mxu0
    %v985 = vmax.f32 %v979, -5.0
    %v986 = vmax.f32 %v982, -5.0
    %v987 = vmin.f32 %v985, 5.0
    %v988 = vmin.f32 %v986, 5.0
    %v989 = vmul.f32 %v987, 1.442695
    %v990 = vpow.pop %v989
    %v991 = vmul.f32 %v988, 1.442695
    %v992 = vpow.pop %v991
    %v993 = vpack.c.bf16 %v992, %v990
    %v994 = vmul.bf16 %v993, %v124
    %v995 = vld [vmem:[#allocation2] sm:$0xff]
    %v996 = vld [vmem:[#allocation2 + $0x8] sm:$0xff]
    %997 = vrot.lane.b32.xlu0 %v62, 16
    %v998 = vpop.permute.xlu0 %997
    %v1001 = vsel %vm63, %v994, 0
    %1003 = vmatprep.subr.bf16.mxu0 0
    %1004 = vmatpush1.bf16.msra.mxu0 %v998
    %1005 = vmatprep.subr.bf16.mxu0 0
    %1006 = vmatpush1.bf16.msra.mxu0 0
    %1007 = vmatprep.subr.bf16.mxu0 0
    %1008 = vmatpush1.bf16.msra.mxu0 0
    %1009 = vmatprep.subr.bf16.mxu0 0
    %1010 = vmatpush1.bf16.msra.mxu0 0
    %1011 = vmatprep.subr.bf16.mxu0 0
    %1012 = vmatpush1.bf16.msra.mxu0 0
    %1013 = vmatprep.subr.bf16.mxu0 0
    %1014 = vmatpush1.bf16.msra.mxu0 0
    %1015 = vmatprep.subr.bf16.mxu0 0
    %1016 = vmatpush1.bf16.msra.mxu0 0
    %1017 = vmatprep.subr.bf16.mxu0 0
    %1018 = vmatpush1.bf16.msra.mxu0 0
    %1019 = vmatprep.subr.bf16.mxu0 0
    %1020 = vmatpush1.bf16.msra.mxu0 0
    %1021 = vmatprep.subr.bf16.mxu0 0
    %1022 = vmatpush1.bf16.msra.mxu0 0
    %1023 = vmatprep.subr.bf16.mxu0 0
    %1024 = vmatpush1.bf16.msra.mxu0 0
    %1025 = vmatprep.subr.bf16.mxu0 0
    %1026 = vmatpush1.bf16.msra.mxu0 0
    %1027 = vmatprep.subr.bf16.mxu0 0
    %1028 = vmatpush1.bf16.msra.mxu0 0
    %1029 = vmatprep.subr.bf16.mxu0 0
    %1030 = vmatpush1.bf16.msra.mxu0 0
    %1031 = vmatprep.subr.bf16.mxu0 0
    %1032 = vmatpush1.bf16.msra.mxu0 0
    %1033 = vmatprep.subr.bf16.mxu0 0
    %1034 = vmatpush1.bf16.msra.mxu0 0
    %1035 = vmatprep.mubr.bf16.mxu0 0
    %1036 = vmatmul.mubr.bf16.gmra.mrb[0].mxu0 %v1001
    %v1037 = vpop.f32.mrb[0].mxu0
    %v1038 = vadd.f32 0.0, %v1037
    %v1039 = vpop.f32.mrb[0].mxu0
    %v1040 = vpop.f32.mrb[0].mxu0
    %v1041 = vadd.f32 0.0, %v1040
    %v1042 = vpop.f32.mrb[0].mxu0
    %1043 = vdwg.mxu0
    %1046 = vrot.lane.b32.xlu0 %v1038, 48
    %v1047 = vpop.permute.xlu0 %1046
    %1048 = vrot.lane.b32.xlu0 %v1041, 48
    %v1049 = vpop.permute.xlu0 %1048
    %v1052 = vadd.f32 %v995, %v1047
    %v1053 = vadd.f32 %v996, %v1049
    %vm1054 = vcmask 523648
    %1055 = vst.msk [vmem:[#allocation2] sm:$0xff] %vm1054, %v1052
    %1056 = vst.msk [vmem:[#allocation2 + $0x8] sm:$0xff] %vm1054, %v1053
    %v1057 = vld [vmem:[#allocation3] sm:$0xff]
    %v1058 = vld [vmem:[#allocation3 + $0x8] sm:$0xff]
    %1059 = vmatprep.subr.bf16.mxu0 0
    %1060 = vmatpush1.bf16.msra.mxu0 1065369472
    %1061 = vmatprep.subr.bf16.mxu0 0
    %1062 = vmatpush1.bf16.msra.mxu0 0
    %1063 = vmatprep.subr.bf16.mxu0 0
    %1064 = vmatpush1.bf16.msra.mxu0 0
    %1065 = vmatprep.subr.bf16.mxu0 0
    %1066 = vmatpush1.bf16.msra.mxu0 0
    %1067 = vmatprep.subr.bf16.mxu0 0
    %1068 = vmatpush1.bf16.msra.mxu0 0
    %1069 = vmatprep.subr.bf16.mxu0 0
    %1070 = vmatpush1.bf16.msra.mxu0 0
    %1071 = vmatprep.subr.bf16.mxu0 0
    %1072 = vmatpush1.bf16.msra.mxu0 0
    %1073 = vmatprep.subr.bf16.mxu0 0
    %1074 = vmatpush1.bf16.msra.mxu0 0
    %1075 = vmatprep.subr.bf16.mxu0 0
    %1076 = vmatpush1.bf16.msra.mxu0 0
    %1077 = vmatprep.subr.bf16.mxu0 0
    %1078 = vmatpush1.bf16.msra.mxu0 0
    %1079 = vmatprep.subr.bf16.mxu0 0
    %1080 = vmatpush1.bf16.msra.mxu0 0
    %1081 = vmatprep.subr.bf16.mxu0 0
    %1082 = vmatpush1.bf16.msra.mxu0 0
    %1083 = vmatprep.subr.bf16.mxu0 0
    %1084 = vmatpush1.bf16.msra.mxu0 0
    %1085 = vmatprep.subr.bf16.mxu0 0
    %1086 = vmatpush1.bf16.msra.mxu0 0
    %1087 = vmatprep.subr.bf16.mxu0 0
    %1088 = vmatpush1.bf16.msra.mxu0 0
    %1089 = vmatprep.subr.bf16.mxu0 0
    %1090 = vmatpush1.bf16.msra.mxu0 0
    %1091 = vmatprep.mubr.bf16.mxu0 0
    %1092 = vmatmul.mubr.bf16.gmra.mrb[0].mxu0 %v1001
    %v1093 = vpop.f32.mrb[0].mxu0
    %v1094 = vadd.f32 0.0, %v1093
    %v1095 = vpop.f32.mrb[0].mxu0
    %v1096 = vpop.f32.mrb[0].mxu0
    %v1097 = vadd.f32 0.0, %v1096
    %v1098 = vpop.f32.mrb[0].mxu0
    %1099 = vdwg.mxu0
    %1102 = vrot.lane.b32.xlu0 %v1094, 48
    %v1103 = vpop.permute.xlu0 %1102
    %1104 = vrot.lane.b32.xlu0 %v1097, 48
    %v1105 = vpop.permute.xlu0 %1104
    %v1108 = vadd.f32 %v1057, %v1103
    %v1109 = vadd.f32 %v1058, %v1105
    %1110 = vst.msk [vmem:[#allocation3] sm:$0xff] %vm1054, %v1108
    %1111 = vst.msk [vmem:[#allocation3 + $0x8] sm:$0xff] %vm1054, %v1109
    %v1112 = vmul.bf16 %v993, %v231
    %v1113 = vld [vmem:[#allocation2] sm:$0xff]
    %v1114 = vld [vmem:[#allocation2 + $0x8] sm:$0xff]
    %v1116 = vsel %vm63, %v1112, 0
    %1118 = vmatprep.subr.bf16.mxu0 0
    %1119 = vmatpush1.bf16.msra.mxu0 %v998
    %1120 = vmatprep.subr.bf16.mxu0 0
    %1121 = vmatpush1.bf16.msra.mxu0 0
    %1122 = vmatprep.subr.bf16.mxu0 0
    %1123 = vmatpush1.bf16.msra.mxu0 0
    %1124 = vmatprep.subr.bf16.mxu0 0
    %1125 = vmatpush1.bf16.msra.mxu0 0
    %1126 = vmatprep.subr.bf16.mxu0 0
    %1127 = vmatpush1.bf16.msra.mxu0 0
    %1128 = vmatprep.subr.bf16.mxu0 0
    %1129 = vmatpush1.bf16.msra.mxu0 0
    %1130 = vmatprep.subr.bf16.mxu0 0
    %1131 = vmatpush1.bf16.msra.mxu0 0
    %1132 = vmatprep.subr.bf16.mxu0 0
    %1133 = vmatpush1.bf16.msra.mxu0 0
    %1134 = vmatprep.subr.bf16.mxu0 0
    %1135 = vmatpush1.bf16.msra.mxu0 0
    %1136 = vmatprep.subr.bf16.mxu0 0
    %1137 = vmatpush1.bf16.msra.mxu0 0
    %1138 = vmatprep.subr.bf16.mxu0 0
    %1139 = vmatpush1.bf16.msra.mxu0 0
    %1140 = vmatprep.subr.bf16.mxu0 0
    %1141 = vmatpush1.bf16.msra.mxu0 0
    %1142 = vmatprep.subr.bf16.mxu0 0
    %1143 = vmatpush1.bf16.msra.mxu0 0
    %1144 = vmatprep.subr.bf16.mxu0 0
    %1145 = vmatpush1.bf16.msra.mxu0 0
    %1146 = vmatprep.subr.bf16.mxu0 0
    %1147 = vmatpush1.bf16.msra.mxu0 0
    %1148 = vmatprep.subr.bf16.mxu0 0
    %1149 = vmatpush1.bf16.msra.mxu0 0
    %1150 = vmatprep.mubr.bf16.mxu0 0
    %1151 = vmatmul.mubr.bf16.gmra.mrb[0].mxu0 %v1116
    %v1152 = vpop.f32.mrb[0].mxu0
    %v1153 = vadd.f32 0.0, %v1152
    %v1154 = vpop.f32.mrb[0].mxu0
    %v1155 = vpop.f32.mrb[0].mxu0
    %v1156 = vadd.f32 0.0, %v1155
    %v1157 = vpop.f32.mrb[0].mxu0
    %1158 = vdwg.mxu0
    %1161 = vrot.lane.b32.xlu0 %v1153, 112
    %v1162 = vpop.permute.xlu0 %1161
    %1163 = vrot.lane.b32.xlu0 %v1156, 112
    %v1164 = vpop.permute.xlu0 %1163
    %v1167 = vadd.f32 %v1113, %v1162
    %v1168 = vadd.f32 %v1114, %v1164
    %vm1169 = vcmask 1048448
    %1170 = vst.msk [vmem:[#allocation2] sm:$0xff] %vm1169, %v1167
    %1171 = vst.msk [vmem:[#allocation2 + $0x8] sm:$0xff] %vm1169, %v1168
    %v1172 = vld [vmem:[#allocation3] sm:$0xff]
    %v1173 = vld [vmem:[#allocation3 + $0x8] sm:$0xff]
    %1174 = vmatprep.subr.bf16.mxu0 0
    %1175 = vmatpush1.bf16.msra.mxu0 1065369472
    %1176 = vmatprep.subr.bf16.mxu0 0
    %1177 = vmatpush1.bf16.msra.mxu0 0
    %1178 = vmatprep.subr.bf16.mxu0 0
    %1179 = vmatpush1.bf16.msra.mxu0 0
    %1180 = vmatprep.subr.bf16.mxu0 0
    %1181 = vmatpush1.bf16.msra.mxu0 0
    %1182 = vmatprep.subr.bf16.mxu0 0
    %1183 = vmatpush1.bf16.msra.mxu0 0
    %1184 = vmatprep.subr.bf16.mxu0 0
    %1185 = vmatpush1.bf16.msra.mxu0 0
    %1186 = vmatprep.subr.bf16.mxu0 0
    %1187 = vmatpush1.bf16.msra.mxu0 0
    %1188 = vmatprep.subr.bf16.mxu0 0
    %1189 = vmatpush1.bf16.msra.mxu0 0
    %1190 = vmatprep.subr.bf16.mxu0 0
    %1191 = vmatpush1.bf16.msra.mxu0 0
    %1192 = vmatprep.subr.bf16.mxu0 0
    %1193 = vmatpush1.bf16.msra.mxu0 0
    %1194 = vmatprep.subr.bf16.mxu0 0
    %1195 = vmatpush1.bf16.msra.mxu0 0
    %1196 = vmatprep.subr.bf16.mxu0 0
    %1197 = vmatpush1.bf16.msra.mxu0 0
    %1198 = vmatprep.subr.bf16.mxu0 0
    %1199 = vmatpush1.bf16.msra.mxu0 0
    %1200 = vmatprep.subr.bf16.mxu0 0
    %1201 = vmatpush1.bf16.msra.mxu0 0
    %1202 = vmatprep.subr.bf16.mxu0 0
    %1203 = vmatpush1.bf16.msra.mxu0 0
    %1204 = vmatprep.subr.bf16.mxu0 0
    %1205 = vmatpush1.bf16.msra.mxu0 0
    %1206 = vmatprep.mubr.bf16.mxu0 0
    %1207 = vmatmul.mubr.bf16.gmra.mrb[0].mxu0 %v1116
    %v1208 = vpop.f32.mrb[0].mxu0
    %v1209 = vadd.f32 0.0, %v1208
    %v1210 = vpop.f32.mrb[0].mxu0
    %v1211 = vpop.f32.mrb[0].mxu0
    %v1212 = vadd.f32 0.0, %v1211
    %v1213 = vpop.f32.mrb[0].mxu0
    %1214 = vdwg.mxu0
    %1217 = vrot.lane.b32.xlu0 %v1209, 112
    %v1218 = vpop.permute.xlu0 %1217
    %1219 = vrot.lane.b32.xlu0 %v1212, 112
    %v1220 = vpop.permute.xlu0 %1219
    %v1223 = vadd.f32 %v1172, %v1218
    %v1224 = vadd.f32 %v1173, %v1220
    %1225 = vst.msk [vmem:[#allocation3] sm:$0xff] %vm1169, %v1223
    %1226 = vst.msk [vmem:[#allocation3 + $0x8] sm:$0xff] %vm1169, %v1224
    // Predicated region
    $region38: #{_forward.3} parent=1 // pred_check
      %p1227 = pneg %p32
    $region39: #{_forward.3} parent=1 // pred_check_branch
      %1229 = sbr.rel (%p1227) target = $region41
    $region40: #{_forward.3} parent=1 // pred_region
      %v1230 = vld [vmem:[%s1] sm:$0xff]
      %v1231 = vld [vmem:[%s1 + $0x8] sm:$0xff]
      %v1232 = vld [vmem:[%s4] sm:$0xff]
      %v1233 = vld [vmem:[%s4 + $0x8] sm:$0xff]
      %v1234 = vld [vmem:[%s4 + $0x10] sm:$0xff]
      %v1235 = vld [vmem:[%s4 + $0x18] sm:$0xff]
      %v1236 = vld [vmem:[%s4 + $0x20] sm:$0xff]
      %v1237 = vld [vmem:[%s4 + $0x28] sm:$0xff]
      %v1238 = vld [vmem:[%s4 + $0x30] sm:$0xff]
      %v1239 = vld [vmem:[%s4 + $0x38] sm:$0xff]
      %v1240 = vld [vmem:[%s5] sm:$0x1]
      %v1241 = vld [vmem:[%s6] sm:$0x1]
      %v1242 = vld [vmem:[%s7] sm:$0x1]
      %v1243 = vld [vmem:[#allocation2] sm:$0xff]
      %v1244 = vld [vmem:[#allocation2 + $0x8] sm:$0xff]
      %v1245 = vld [vmem:[#allocation3] sm:$0xff]
      %v1246 = vld [vmem:[#allocation3 + $0x8] sm:$0xff]
      %v1247 = vadd.f32 %v1245, 1.0
      %v1248 = vadd.f32 %v1246, 1.0
      %v1249 = vrcp.pop %v1247
      %v1250 = vmul.f32 %v1243, %v1249
      %v1251 = vrcp.pop %v1248
      %v1252 = vmul.f32 %v1244, %v1251
      %v1254 = vlaneseq
      %v1255 = vshrl.u32 %v1254, 7
      %v1256 = vsub.s32 0, %v1255
      %v1257 = vrot.slane %v1240, %v1256
      %vm1259 = vcmask 523264
      %v1261 = vsel %vm1259, %v1250, 0
      %v1264 = vsel %vm1259, %v1252, 0
      %1266 = vmatprep.subr.mxu0 0.0
      %1267 = vmatpush1.msra.mxu0 %v1232
      %1268 = vmatprep.subr.mxu0 0.0
      %1269 = vmatpush1.msra.mxu0 %v1233
      %1270 = vmatprep.subr.mxu0 0.0
      %1271 = vmatpush1.msra.mxu0 %v1234
      %1272 = vmatprep.subr.mxu0 0.0
      %1273 = vmatpush1.msra.mxu0 %v1235
      %1274 = vmatprep.subr.mxu0 0.0
      %1275 = vmatpush1.msra.mxu0 %v1236
      %1276 = vmatprep.subr.mxu0 0.0
      %1277 = vmatpush1.msra.mxu0 %v1237
      %1278 = vmatprep.subr.mxu0 0.0
      %1279 = vmatpush1.msra.mxu0 %v1238
      %1280 = vmatprep.subr.mxu0 0.0
      %1281 = vmatpush1.msra.mxu0 %v1239
      %1282 = vmatprep.subr.mxu0 0.0
      %1283 = vmatpush1.msra.mxu0 0.0
      %1284 = vmatprep.subr.mxu0 0.0
      %1285 = vmatpush1.msra.mxu0 0.0
      %1286 = vmatprep.subr.mxu0 0.0
      %1287 = vmatpush1.msra.mxu0 0.0
      %1288 = vmatprep.subr.mxu0 0.0
      %1289 = vmatpush1.msra.mxu0 0.0
      %1290 = vmatprep.subr.mxu0 0.0
      %1291 = vmatpush1.msra.mxu0 0.0
      %1292 = vmatprep.subr.mxu0 0.0
      %1293 = vmatpush1.msra.mxu0 0.0
      %1294 = vmatprep.subr.mxu0 0.0
      %1295 = vmatpush1.msra.mxu0 0.0
      %1296 = vmatprep.subr.mxu0 0.0
      %1297 = vmatpush1.msra.mxu0 0.0
      %1298 = vmatprep.subr.mxu0 0.0
      %1299 = vmatpush1.msra.mxu0 0.0
      %1300 = vmatprep.subr.mxu0 0.0
      %1301 = vmatpush1.msra.mxu0 0.0
      %1302 = vmatprep.subr.mxu0 0.0
      %1303 = vmatpush1.msra.mxu0 0.0
      %1304 = vmatprep.subr.mxu0 0.0
      %1305 = vmatpush1.msra.mxu0 0.0
      %1306 = vmatprep.subr.mxu0 0.0
      %1307 = vmatpush1.msra.mxu0 0.0
      %1308 = vmatprep.subr.mxu0 0.0
      %1309 = vmatpush1.msra.mxu0 0.0
      %1310 = vmatprep.subr.mxu0 0.0
      %1311 = vmatpush1.msra.mxu0 0.0
      %1312 = vmatprep.subr.mxu0 0.0
      %1313 = vmatpush1.msra.mxu0 0.0
      %1314 = vmatprep.subr.mxu0 0.0
      %1315 = vmatpush1.msra.mxu0 0.0
      %1316 = vmatprep.subr.mxu0 0.0
      %1317 = vmatpush1.msra.mxu0 0.0
      %1318 = vmatprep.subr.mxu0 0.0
      %1319 = vmatpush1.msra.mxu0 0.0
      %1320 = vmatprep.subr.mxu0 0.0
      %1321 = vmatpush1.msra.mxu0 0.0
      %1322 = vmatprep.subr.mxu0 0.0
      %1323 = vmatpush1.msra.mxu0 0.0
      %1324 = vmatprep.subr.mxu0 0.0
      %1325 = vmatpush1.msra.mxu0 0.0
      %1326 = vmatprep.subr.mxu0 0.0
      %1327 = vmatpush1.msra.mxu0 0.0
      %1328 = vmatprep.subr.mxu0 0.0
      %1329 = vmatpush1.msra.mxu0 0.0
      %1330 = vmatprep.mubr.f32.mxu0 0.0
      %1331 = vmatmul.mubr.f32.gmra.mrb[0].mxu0 %v1261
      %v1332 = vpop.f32.mrb[0].mxu0
      %v1333 = vadd.f32 %v1257, %v1332
      %v1334 = vpop.f32.mrb[0].mxu0
      %1335 = vmatprep.mubr.f32.mxu0 0.0
      %1336 = vmatmul.mubr.f32.gmra.mrb[0].mxu0 %v1264
      %v1337 = vpop.f32.mrb[0].mxu0
      %v1338 = vadd.f32 %v1257, %v1337
      %v1339 = vpop.f32.mrb[0].mxu0
      %1340 = vdwg.mxu0
      %v1341 = vadd.f32 %v1230, %v1333
      %v1342 = vadd.f32 %v1231, %v1338
      %v1343 = vsel %vm1259, %v1341, 0.0
      %1344 = vadd.xlane.f32.xlu0 %v1343
      %v1345 = vpop.xlane.xlu0 %1344
      %v1346 = vsel %vm1259, %v1342, 0.0
      %1347 = vadd.xlane.f32.xlu0 %v1346
      %v1348 = vpop.xlane.xlu0 %1347
      %v1349 = vrcp.pop 64.0
      %v1350 = vmul.f32 %v1345, %v1349
      %v1351 = vmul.f32 %v1348, %v1349
      %v1352 = vsub.f32 %v1341, %v1350
      %v1353 = vsub.f32 %v1342, %v1351
      %v1354 = vmul.f32 %v1352, %v1352
      %v1355 = vmul.f32 %v1353, %v1353
      %v1356 = vsel %vm1259, %v1354, 0.0
      %1357 = vadd.xlane.f32.xlu0 %v1356
      %v1358 = vpop.xlane.xlu0 %1357
      %v1359 = vsel %vm1259, %v1355, 0.0
      %1360 = vadd.xlane.f32.xlu0 %v1359
      %v1361 = vpop.xlane.xlu0 %1360
      %v1362 = vmul.f32 %v1358, %v1349
      %v1363 = vmul.f32 %v1361, %v1349
      %v1364 = vadd.f32 %v1362, 1e-05
      %v1365 = vadd.f32 %v1363, 1e-05
      %v1366 = vrsqrt.pop %v1364
      %v1367 = vrsqrt.pop %v1365
      %v1368 = vmul.f32 %v1352, %v1366
      %v1369 = vmul.f32 %v1353, %v1367
      %v1371 = vlaneseq
      %v1372 = vshrl.u32 %v1371, 7
      %v1373 = vsub.s32 0, %v1372
      %v1374 = vrot.slane %v1241, %v1373
      %v1376 = vmul.f32 %v1368, %v1374
      %v1377 = vmul.f32 %v1369, %v1374
      %v1379 = vlaneseq
      %v1380 = vshrl.u32 %v1379, 7
      %v1381 = vsub.s32 0, %v1380
      %v1382 = vrot.slane %v1242, %v1381
      %v1384 = vadd.f32 %v1376, %v1382
      %v1385 = vadd.f32 %v1377, %v1382
      %v1386 = vadd.f32 %v1341, %v1384
      %v1387 = vadd.f32 %v1342, %v1385
      %1388 = vrot.lane.b32.xlu0 %v1250, 64
      %v1389 = vpop.permute.xlu0 %1388
      %1390 = vrot.lane.b32.xlu0 %v1252, 64
      %v1391 = vpop.permute.xlu0 %1390
      %v1392 = vsel %vm1259, %v1389, 0
      %v1394 = vsel %vm1259, %v1391, 0
      %1396 = vmatprep.subr.mxu0 0.0
      %1397 = vmatpush1.msra.mxu0 %v1232
      %1398 = vmatprep.subr.mxu0 0.0
      %1399 = vmatpush1.msra.mxu0 %v1233
      %1400 = vmatprep.subr.mxu0 0.0
      %1401 = vmatpush1.msra.mxu0 %v1234
      %1402 = vmatprep.subr.mxu0 0.0
      %1403 = vmatpush1.msra.mxu0 %v1235
      %1404 = vmatprep.subr.mxu0 0.0
      %1405 = vmatpush1.msra.mxu0 %v1236
      %1406 = vmatprep.subr.mxu0 0.0
      %1407 = vmatpush1.msra.mxu0 %v1237
      %1408 = vmatprep.subr.mxu0 0.0
      %1409 = vmatpush1.msra.mxu0 %v1238
      %1410 = vmatprep.subr.mxu0 0.0
      %1411 = vmatpush1.msra.mxu0 %v1239
      %1412 = vmatprep.subr.mxu0 0.0
      %1413 = vmatpush1.msra.mxu0 0.0
      %1414 = vmatprep.subr.mxu0 0.0
      %1415 = vmatpush1.msra.mxu0 0.0
      %1416 = vmatprep.subr.mxu0 0.0
      %1417 = vmatpush1.msra.mxu0 0.0
      %1418 = vmatprep.subr.mxu0 0.0
      %1419 = vmatpush1.msra.mxu0 0.0
      %1420 = vmatprep.subr.mxu0 0.0
      %1421 = vmatpush1.msra.mxu0 0.0
      %1422 = vmatprep.subr.mxu0 0.0
      %1423 = vmatpush1.msra.mxu0 0.0
      %1424 = vmatprep.subr.mxu0 0.0
      %1425 = vmatpush1.msra.mxu0 0.0
      %1426 = vmatprep.subr.mxu0 0.0
      %1427 = vmatpush1.msra.mxu0 0.0
      %1428 = vmatprep.subr.mxu0 0.0
      %1429 = vmatpush1.msra.mxu0 0.0
      %1430 = vmatprep.subr.mxu0 0.0
      %1431 = vmatpush1.msra.mxu0 0.0
      %1432 = vmatprep.subr.mxu0 0.0
      %1433 = vmatpush1.msra.mxu0 0.0
      %1434 = vmatprep.subr.mxu0 0.0
      %1435 = vmatpush1.msra.mxu0 0.0
      %1436 = vmatprep.subr.mxu0 0.0
      %1437 = vmatpush1.msra.mxu0 0.0
      %1438 = vmatprep.subr.mxu0 0.0
      %1439 = vmatpush1.msra.mxu0 0.0
      %1440 = vmatprep.subr.mxu0 0.0
      %1441 = vmatpush1.msra.mxu0 0.0
      %1442 = vmatprep.subr.mxu0 0.0
      %1443 = vmatpush1.msra.mxu0 0.0
      %1444 = vmatprep.subr.mxu0 0.0
      %1445 = vmatpush1.msra.mxu0 0.0
      %1446 = vmatprep.subr.mxu0 0.0
      %1447 = vmatpush1.msra.mxu0 0.0
      %1448 = vmatprep.subr.mxu0 0.0
      %1449 = vmatpush1.msra.mxu0 0.0
      %1450 = vmatprep.subr.mxu0 0.0
      %1451 = vmatpush1.msra.mxu0 0.0
      %1452 = vmatprep.subr.mxu0 0.0
      %1453 = vmatpush1.msra.mxu0 0.0
      %1454 = vmatprep.subr.mxu0 0.0
      %1455 = vmatpush1.msra.mxu0 0.0
      %1456 = vmatprep.subr.mxu0 0.0
      %1457 = vmatpush1.msra.mxu0 0.0
      %1458 = vmatprep.subr.mxu0 0.0
      %1459 = vmatpush1.msra.mxu0 0.0
      %1460 = vmatprep.mubr.f32.mxu0 0.0
      %1461 = vmatmul.mubr.f32.gmra.mrb[0].mxu0 %v1392
      %v1462 = vpop.f32.mrb[0].mxu0
      %v1463 = vadd.f32 %v1257, %v1462
      %v1464 = vpop.f32.mrb[0].mxu0
      %1465 = vmatprep.mubr.f32.mxu0 0.0
      %1466 = vmatmul.mubr.f32.gmra.mrb[0].mxu0 %v1394
      %v1467 = vpop.f32.mrb[0].mxu0
      %v1468 = vadd.f32 %v1257, %v1467
      %v1469 = vpop.f32.mrb[0].mxu0
      %1470 = vdwg.mxu0
      %v1471 = vadd.f32 %v1230, %v1463
      %v1472 = vadd.f32 %v1231, %v1468
      %v1473 = vsel %vm1259, %v1471, 0.0
      %1474 = vadd.xlane.f32.xlu0 %v1473
      %v1475 = vpop.xlane.xlu0 %1474
      %v1476 = vsel %vm1259, %v1472, 0.0
      %1477 = vadd.xlane.f32.xlu0 %v1476
      %v1478 = vpop.xlane.xlu0 %1477
      %v1479 = vmul.f32 %v1475, %v1349
      %v1480 = vmul.f32 %v1478, %v1349
      %v1481 = vsub.f32 %v1471, %v1479
      %v1482 = vsub.f32 %v1472, %v1480
      %v1483 = vmul.f32 %v1481, %v1481
      %v1484 = vmul.f32 %v1482, %v1482
      %v1485 = vsel %vm1259, %v1483, 0.0
      %1486 = vadd.xlane.f32.xlu0 %v1485
      %v1487 = vpop.xlane.xlu0 %1486
      %v1488 = vsel %vm1259, %v1484, 0.0
      %1489 = vadd.xlane.f32.xlu0 %v1488
      %v1490 = vpop.xlane.xlu0 %1489
      %v1491 = vmul.f32 %v1487, %v1349
      %v1492 = vmul.f32 %v1490, %v1349
      %v1493 = vadd.f32 %v1491, 1e-05
      %v1494 = vadd.f32 %v1492, 1e-05
      %v1495 = vrsqrt.pop %v1493
      %v1496 = vrsqrt.pop %v1494
      %v1497 = vmul.f32 %v1481, %v1495
      %v1498 = vmul.f32 %v1482, %v1496
      %v1499 = vmul.f32 %v1497, %v1374
      %v1500 = vmul.f32 %v1498, %v1374
      %v1501 = vadd.f32 %v1499, %v1382
      %v1502 = vadd.f32 %v1500, %v1382
      %v1503 = vadd.f32 %v1471, %v1501
      %v1504 = vadd.f32 %v1472, %v1502
      %1507 = vrot.lane.b32.xlu0 %v1503, 64
      %v1508 = vpop.permute.xlu0 %1507
      %1509 = vrot.lane.b32.xlu0 %v1504, 64
      %v1510 = vpop.permute.xlu0 %1509
      %v1513 = vsel %vm1259, %v1386, %v1508
      %v1514 = vsel %vm1259, %v1387, %v1510
      %1515 = vst [vmem:[#allocation4] sm:$0xff] %v1513
      %1516 = vst [vmem:[#allocation4 + $0x8] sm:$0xff] %v1514
    $region41: #{_forward.3} parent=1 // pred_fallthru
      _
    // Predicated region
    $region42: #{_forward.3} parent=1 // pred_check
      _
    $region43: #{_forward.3} parent=1 // pred_check_branch
      %1518 = sbr.rel (0) target = $region45
    $region44: #{_forward.3} parent=1 // pred_region
      %s1520 = ssub.s32 256, 256
      %1521 = vsyncadd [#allocation5], %s1520
      %s1522 = sshll.u32 [#allocation4], 4
      %s1523 = int_to_ptr.vmem [resolvable:$true] %s1522
      %1528 = dma.vmem_to_hbm [thread:$0]  %s1523, 256, %s8, [#allocation5], 128, 128, 8
    $region45: #{_forward.3} parent=1 // pred_fallthru
      _
    // Predicated region
    $region46: #{_forward.3} parent=1 // pred_check
      _
    $region47: #{_forward.3} parent=1 // pred_check_branch
      %1530 = sbr.rel (0) target = $region49
    $region48: #{_forward.3} parent=1 // pred_region
      %1531 = dma.done [#allocation5], 256
    $region49: #{_forward.3} parent=1 // pred_fallthru
      _
    %1532 = vsyncpa [#allocation5], 1

</llo_original>
